<compile_context>
chip_gen: v7x
topology: tpu7x:2x2x1
jax: 0.10.0
libtpu: 0.0.40
codegen_flags: <defaults>
</compile_context>

<pallas_src>
import functools
import math

import jax
import jax.numpy as jnp
import numpy as np
from jax.experimental import pallas as pl
from jax.experimental.pallas import tpu as pltpu


def _transition_seq_kernel(tpos_ref, div_ref, keyrow_ref, co_ref, no_ref, un_ref,
                           h0_ref, w_ihv_ref, b_ihv_ref, w_hh_ref, b_hh_ref,
                           w_qk_ref, b_qk_ref,
                           out_ref, hlast_ref, h_scr, *, hidden, qk_pad):
    f32, bf16 = jnp.float32, jnp.bfloat16
    H, QP = hidden, qk_pad
    s = pl.program_id(0)

    # Recurrent carry lives in VMEM scratch across grid steps; seed it once from h0.
    @pl.when(s == 0)
    def _():
        h_scr[...] = h0_ref[...]

    gate = tpos_ref[s, 0]                       # 1.0 iff timestep t > 0 (SMEM scalar)
    d = div_ref[0]                              # (N, 3) raw masks
    m1 = d[:, 0:1] > 0.0                        # (N, 1)
    m2 = d[:, 1:2] * gate > 0.0
    m3 = d[:, 2:3] * gate > 0.0
    m23 = jnp.logical_or(m2, m3)
    key_mask = keyrow_ref[0] * gate > 0.0       # (1, N)

    co = co_ref[0]                              # (N, G)
    h_prev = h_scr[...]                         # (N, H) f32

    # ---- structured projections (weights stay VMEM-resident for all T steps) ----------
    giv = jnp.dot(co.astype(bf16), w_ihv_ref[...],
                  preferred_element_type=f32) + b_ihv_ref[...]        # (N, 3H+HO)
    gh = jnp.dot(h_prev, w_hh_ref[...],
                 preferred_element_type=f32) + b_hh_ref[...]          # (N, 3H), f32 path
    gi = giv[:, 0:3 * H]
    v = giv[:, 3 * H:]

    # ---- GRU cell (gate order r|z|n), computed densely, masked later -------------------
    r = jax.nn.sigmoid(gi[:, 0:H] + gh[:, 0:H])
    z = jax.nn.sigmoid(gi[:, H:2 * H] + gh[:, H:2 * H])
    n_ = jnp.tanh(gi[:, 2 * H:3 * H] + r * gh[:, 2 * H:3 * H])
    h_gru = (1.0 - z) * n_ + z * h_prev                                # (N, H)

    # ---- single-head attention over the m2 ∪ m3 key set (q_in select in-kernel) --------
    q_in = jnp.where(m2, no_ref[0], jnp.where(m3, un_ref[0], 0.0))     # (N, G)
    qk = jnp.dot(q_in.astype(bf16), w_qk_ref[...],
                 preferred_element_type=f32) + b_qk_ref[...]           # (N, 2*QP)
    q = qk[:, 0:QP]                    # 1/sqrt(att) already folded into q columns
    k = qk[:, QP:2 * QP]               # padded columns are exactly zero -> no effect
    logits = jax.lax.dot_general(q.astype(bf16), k.astype(bf16),
                                 (((1,), (1,)), ((), ())),
                                 preferred_element_type=f32)           # (N, N)
    logits = jnp.where(key_mask, logits, jnp.float32(-1e30))
    e = jnp.exp(logits - jnp.max(logits, axis=-1, keepdims=True))
    e = jnp.where(key_mask, e, 0.0)
    denom = jnp.sum(e, axis=-1, keepdims=True)
    score = e * pl.reciprocal(jnp.maximum(denom, jnp.float32(1e-30)), approx=True)
    h_attn = jnp.tanh(jnp.dot(score.astype(bf16), v.astype(bf16),
                              preferred_element_type=f32))             # (N, HO)

    # ---- scatter back into h_new, reduce the two branch outputs ------------------------
    h_next = jnp.where(m23, h_attn, jnp.where(m1, h_gru, 0.0))
    h_scr[...] = h_next
    hlast_ref[...] = h_next            # constant index map -> HBM writeback once, at end

    neg = jnp.full_like(h_gru, -1e30)
    out_m1 = jnp.max(jnp.where(m1, h_gru, neg), axis=0, keepdims=True)     # (1, H)
    out_m23 = jnp.max(jnp.where(m23, h_attn, neg), axis=0, keepdims=True)  # (1, H)
    combined = jnp.maximum(out_m1, out_m23)
    # Empty-branch maxima are exactly -1e30, so a vector threshold replaces the scalar
    # validity reductions.
    # TODO(synk): the degenerate "both branches empty" case returns a zero H-vector here,
    # while PyTorch returns the python scalar 0 (shapes must be static on TPU).
    out_ref[0] = jnp.where(combined > jnp.float32(-1e29), combined,
                           jnp.zeros_like(combined))


def build_fused_params(params):
    """Build kernel-ready weights ONCE per parameter set (hoisted out of the per-call
    wrapper). Non-recurrent weights are bf16; the recurrent w_hh stays f32 to avoid
    hidden-state drift; q/k columns are zero-padded to a 128-lane multiple and the
    1/sqrt(att) scale is folded into the q columns/bias."""
    f32, bf16 = jnp.float32, jnp.bfloat16
    g, a = params["w_q_t"].shape
    h = params["w_hh_t"].shape[0]
    ho = params["w_v_t"].shape[1]
    qp = max(128, ((a + 127) // 128) * 128)
    scale = jnp.asarray(1.0 / math.sqrt(a), f32)
    pad = ((0, 0), (0, qp - a))
    w_ihv = jnp.concatenate([params["w_ih_t"], params["w_v_t"]], axis=1).astype(bf16)
    b_ihv = jnp.concatenate([params["b_ih"], params["b_v"]], axis=1).astype(f32)
    w_hh = params["w_hh_t"].astype(f32)
    b_hh = params["b_hh"].astype(f32)
    w_qk = jnp.concatenate([jnp.pad(params["w_q_t"] * scale, pad),
                            jnp.pad(params["w_k_t"], pad)], axis=1).astype(bf16)
    b_qk = jnp.concatenate([jnp.pad(params["b_q"] * scale, pad),
                            jnp.pad(params["b_k"], pad)], axis=1).astype(f32)
    return dict(w_ihv=w_ihv, b_ihv=b_ihv, w_hh=w_hh, b_hh=b_hh, w_qk=w_qk, b_qk=b_qk,
                graph=g, hidden=h, att=a, out=ho, qk_pad=qp)


def transition_layer_forward_sequence(t_start, co_seq, divided_seq, no_seq, un_seq,
                                      fused, hidden_state=None):
    """T consecutive TransitionLayer steps (t = t_start .. t_start+T-1) in ONE pallas_call."""
    f32 = jnp.float32
    T, n, _ = co_seq.shape
    h, ho, qp = fused["hidden"], fused["out"], fused["qk_pad"]
    assert ho == h, "t_output_size must equal hidden_size (as in the PyTorch module)"
    if hidden_state is None:
        hidden_state = jnp.zeros((n, h), f32)
    h0 = hidden_state.astype(f32)

    d = divided_seq.astype(f32)                                     # (T, N, 3)
    keyrow = jnp.maximum(d[:, :, 1], d[:, :, 2]).reshape(T, 1, n)   # (T, 1, N)
    t_vals = jnp.asarray(t_start, jnp.int32) + jnp.arange(T, dtype=jnp.int32)
    tpos = (t_vals > 0).astype(f32).reshape(T, 1)                   # (T, 1) SMEM scalars

    co = co_seq.astype(f32)
    no = no_seq.astype(f32)
    un = un_seq.astype(f32)

    def step_spec(shape):
        rank = len(shape)
        return pl.BlockSpec((1,) + tuple(shape[1:]),
                            lambda s, _r=rank: (s,) + (0,) * (_r - 1))

    def const_spec(shape):
        rank = len(shape)
        return pl.BlockSpec(tuple(shape), lambda s, _r=rank: (0,) * _r)

    in_specs = [
        pl.BlockSpec(memory_space=pltpu.MemorySpace.SMEM),          # tpos (t>0 gate scalars)
        step_spec(d.shape), step_spec(keyrow.shape),
        step_spec(co.shape), step_spec(no.shape), step_spec(un.shape),
        const_spec(h0.shape),
        const_spec(fused["w_ihv"].shape), const_spec(fused["b_ihv"].shape),
        const_spec(fused["w_hh"].shape), const_spec(fused["b_hh"].shape),
        const_spec(fused["w_qk"].shape), const_spec(fused["b_qk"].shape),
    ]
    out_specs = [step_spec((T, 1, h)), const_spec((n, h))]
    out_shape = [jax.ShapeDtypeStruct((T, 1, h), f32),
                 jax.ShapeDtypeStruct((n, h), f32)]

    kernel = functools.partial(_transition_seq_kernel, hidden=h, qk_pad=qp)

    # TODO(synk): for production code_num (thousands) the (N,N) softmax must be key-tiled
    # (flash-style online softmax over an extra grid axis) to fit VMEM; at demo N it fits.
    # TODO(synk): batching independent sequences over a leading "parallel" grid axis (and
    # stacking them into the MXU row dim) would fill both v7x TensorCores and the 256-row
    # MXU; a single sequence is inherently sequential.
    outputs, h_last = pl.pallas_call(
        kernel,
        grid=(T,),
        in_specs=in_specs,
        out_specs=out_specs,
        out_shape=out_shape,
        scratch_shapes=[pltpu.VMEM((n, h), f32)],
        compiler_params=pltpu.CompilerParams(
            dimension_semantics=("arbitrary",),          # time recurrence is sequential
            vmem_limit_bytes=48 * 1024 * 1024),
    )(tpos, d, keyrow, co, no, un, h0,
      fused["w_ihv"], fused["b_ihv"], fused["w_hh"], fused["b_hh"],
      fused["w_qk"], fused["b_qk"])
    return outputs.reshape(T, h), h_last


def transition_layer_forward(t, co_embeddings, divided, no_embeddings,
                             unrelated_embeddings, fused, hidden_state=None):
    """Single-step call with the original module's signature (uses the T=1 fused path)."""
    outs, h_new = transition_layer_forward_sequence(
        t, co_embeddings[None], divided[None], no_embeddings[None],
        unrelated_embeddings[None], fused, hidden_state=hidden_state)
    return outs[0], h_new


def init_params(key, graph_size, hidden_size, attention_size, output_size):
    keys = jax.random.split(key, 10)
    s = 0.1
    return dict(
        w_ih_t=s * jax.random.normal(keys[0], (graph_size, 3 * hidden_size), jnp.float32),
        b_ih=s * jax.random.normal(keys[1], (1, 3 * hidden_size), jnp.float32),
        w_hh_t=s * jax.random.normal(keys[2], (hidden_size, 3 * hidden_size), jnp.float32),
        b_hh=s * jax.random.normal(keys[3], (1, 3 * hidden_size), jnp.float32),
        w_q_t=s * jax.random.normal(keys[4], (graph_size, attention_size), jnp.float32),
        b_q=s * jax.random.normal(keys[5], (1, attention_size), jnp.float32),
        w_k_t=s * jax.random.normal(keys[6], (graph_size, attention_size), jnp.float32),
        b_k=s * jax.random.normal(keys[7], (1, attention_size), jnp.float32),
        w_v_t=s * jax.random.normal(keys[8], (graph_size, output_size), jnp.float32),
        b_v=s * jax.random.normal(keys[9], (1, output_size), jnp.float32),
    )


def _reference(t, co, divided, no_emb, un_emb, params, hidden_state):
    """Pure-numpy replication of the PyTorch gather/scatter forward (one step)."""
    co = np.asarray(co); no_emb = np.asarray(no_emb); un_emb = np.asarray(un_emb)
    divided = np.asarray(divided); h0 = np.asarray(hidden_state)
    p = {k: np.asarray(v) for k, v in params.items()}
    n = co.shape[0]
    h = p["w_hh_t"].shape[0]
    a = p["w_q_t"].shape[1]
    m1_idx = np.where(divided[:, 0] > 0)[0]
    m2_idx = np.where(divided[:, 1] > 0)[0]
    m3_idx = np.where(divided[:, 2] > 0)[0]
    h_new = np.zeros((n, h), np.float32)
    output_m1 = output_m23 = None
    if len(m1_idx) > 0:
        x = co[m1_idx]; hh = h0[m1_idx]
        gi = x @ p["w_ih_t"] + p["b_ih"]
        gh = hh @ p["w_hh_t"] + p["b_hh"]
        sig = lambda v: 1.0 / (1.0 + np.exp(-v))
        r = sig(gi[:, :h] + gh[:, :h])
        z = sig(gi[:, h:2 * h] + gh[:, h:2 * h])
        nn_ = np.tanh(gi[:, 2 * h:] + r * gh[:, 2 * h:])
        h_m1 = (1.0 - z) * nn_ + z * hh
        h_new[m1_idx] = h_m1
        output_m1 = h_m1.max(axis=-2)
    if t > 0 and len(m2_idx) + len(m3_idx) > 0:
        q_in = np.vstack([no_emb[m2_idx], un_emb[m3_idx]])
        v_in = np.vstack([co[m2_idx], co[m3_idx]])
        q = q_in @ p["w_q_t"] + p["b_q"]
        k = q_in @ p["w_k_t"] + p["b_k"]
        v = v_in @ p["w_v_t"] + p["b_v"]
        logits = q @ k.T / math.sqrt(a)
        logits = logits - logits.max(axis=-1, keepdims=True)
        e = np.exp(logits)
        score = e / e.sum(axis=-1, keepdims=True)
        h_m23 = np.tanh(score @ v)
        h_new[m2_idx] = h_m23[:len(m2_idx)]
        h_new[m3_idx] = h_m23[len(m2_idx):]
        output_m23 = h_m23.max(axis=-2)
    if output_m1 is None:
        output = output_m23
    elif output_m23 is None:
        output = output_m1
    else:
        output = np.maximum(output_m1, output_m23)
    return output, h_new


if __name__ == "__main__":
    # Small shapes consistent with TransitionLayer (H multiple of 128 -> lane-dense):
    code_num, graph_size = 16, 32
    hidden_size = 128
    t_attention_size, t_output_size = 64, hidden_size
    T, t_start = 3, 1

    root = jax.random.PRNGKey(0)
    k_co, k_no, k_un, k_h0, k_par = jax.random.split(root, 5)
    co_seq = jax.random.normal(k_co, (T, code_num, graph_size), jnp.float32)
    no_seq = jax.random.normal(k_no, (T, code_num, graph_size), jnp.float32)
    un_seq = jax.random.normal(k_un, (T, code_num, graph_size), jnp.float32)
    hidden_state = jax.random.normal(k_h0, (code_num, hidden_size), jnp.float32)

    idx = jnp.arange(code_num)
    divided_seq = jnp.stack(
        [jnp.stack([((idx + s) % 3 == 0), ((idx + s) % 3 == 1), ((idx + s) % 3 == 2)],
                   axis=1).astype(jnp.float32) for s in range(T)], axis=0)   # (T, N, 3)

    params = init_params(k_par, graph_size, hidden_size, t_attention_size, t_output_size)
    fused = build_fused_params(params)      # built ONCE; reused for every call below

    # ---- pure-numpy per-step reference (computed first; kernel never aliases inputs) ----
    ref_outs, h_ref = [], np.asarray(hidden_state)
    for s in range(T):
        o, h_ref = _reference(t_start + s, co_seq[s], divided_seq[s], no_seq[s],
                              un_seq[s], params, h_ref)
        ref_outs.append(o)
    ref_outs = np.stack(ref_outs, axis=0)

    # ---- fused T-step kernel -------------------------------------------------------------
    outputs, h_last = transition_layer_forward_sequence(
        t_start, co_seq, divided_seq, no_seq, un_seq, fused, hidden_state=hidden_state)
    outputs = jax.block_until_ready(outputs)
    h_last = jax.block_until_ready(h_last)
    np.testing.assert_allclose(np.asarray(outputs), ref_outs, rtol=3e-2, atol=3e-2)
    np.testing.assert_allclose(np.asarray(h_last), h_ref, rtol=3e-2, atol=3e-2)

    # ---- single-step call at t=0 exercises the gated (attention-off) path -----------------
    out0, hnew0 = transition_layer_forward(0, co_seq[0], divided_seq[0], no_seq[0],
                                           un_seq[0], fused, hidden_state=hidden_state)
    ref_o0, ref_h0 = _reference(0, co_seq[0], divided_seq[0], no_seq[0], un_seq[0],
                                params, np.asarray(hidden_state))
    np.testing.assert_allclose(np.asarray(jax.block_until_ready(out0)), ref_o0,
                               rtol=3e-2, atol=3e-2)
    np.testing.assert_allclose(np.asarray(jax.block_until_ready(hnew0)), ref_h0,
                               rtol=3e-2, atol=3e-2)

    print("KERNEL_OK")
</pallas_src>

<mosaic_0001>
module attributes {stable_mosaic.version = 11 : i64} {
  func.func @_transition_seq_kernel(%arg0: i32, %arg1: memref<3x1xf32, #tpu.memory_space<smem>>, %arg2: memref<1x16x3xf32, #tpu.memory_space<vmem>>, %arg3: memref<1x1x16xf32, #tpu.memory_space<vmem>>, %arg4: memref<1x16x32xf32, #tpu.memory_space<vmem>>, %arg5: memref<1x16x32xf32, #tpu.memory_space<vmem>>, %arg6: memref<1x16x32xf32, #tpu.memory_space<vmem>>, %arg7: memref<16x128xf32, #tpu.memory_space<vmem>>, %arg8: memref<32x512xbf16, #tpu.memory_space<vmem>>, %arg9: memref<1x512xf32, #tpu.memory_space<vmem>>, %arg10: memref<128x384xf32, #tpu.memory_space<vmem>>, %arg11: memref<1x384xf32, #tpu.memory_space<vmem>>, %arg12: memref<32x256xbf16, #tpu.memory_space<vmem>>, %arg13: memref<1x256xf32, #tpu.memory_space<vmem>>, %arg14: memref<1x1x128xf32, #tpu.memory_space<vmem>>, %arg15: memref<16x128xf32, #tpu.memory_space<vmem>>, %arg16: memref<16x128xf32, #tpu.memory_space<vmem>>) attributes {dimension_semantics = [#tpu.dimension_semantics<arbitrary>], iteration_bounds = array<i64: 3>, scalar_prefetch = 0 : i64, scratch_operands = 1 : i64, tpu.core_type = #tpu.core_type<tc>, window_params = [{transform_indices = @transform_0, window_bounds = array<i64: 3, 1>}, {transform_indices = @transform_1, window_bounds = array<i64: 1, 16, 3>}, {transform_indices = @transform_2, window_bounds = array<i64: 1, 1, 16>}, {transform_indices = @transform_3, window_bounds = array<i64: 1, 16, 32>}, {transform_indices = @transform_4, window_bounds = array<i64: 1, 16, 32>}, {transform_indices = @transform_5, window_bounds = array<i64: 1, 16, 32>}, {pipeline_mode = #tpu.pipeline_mode<synchronous>, transform_indices = @transform_6, window_bounds = array<i64: 16, 128>}, {pipeline_mode = #tpu.pipeline_mode<synchronous>, transform_indices = @transform_7, window_bounds = array<i64: 32, 512>}, {pipeline_mode = #tpu.pipeline_mode<synchronous>, transform_indices = @transform_8, window_bounds = array<i64: 1, 512>}, {pipeline_mode = #tpu.pipeline_mode<synchronous>, transform_indices = @transform_9, window_bounds = array<i64: 128, 384>}, {pipeline_mode = #tpu.pipeline_mode<synchronous>, transform_indices = @transform_10, window_bounds = array<i64: 1, 384>}, {pipeline_mode = #tpu.pipeline_mode<synchronous>, transform_indices = @transform_11, window_bounds = array<i64: 32, 256>}, {pipeline_mode = #tpu.pipeline_mode<synchronous>, transform_indices = @transform_12, window_bounds = array<i64: 1, 256>}, {transform_indices = @transform_13, window_bounds = array<i64: 1, 1, 128>}, {pipeline_mode = #tpu.pipeline_mode<synchronous>, transform_indices = @transform_14, window_bounds = array<i64: 16, 128>}]} {
    %c0_i32 = arith.constant 0 : i32
    %0 = arith.cmpi eq, %arg0, %c0_i32 : i32
    %1 = arith.extui %0 : i1 to i32
    %c0_i32_0 = arith.constant 0 : i32
    %2 = arith.cmpi ne, %1, %c0_i32_0 : i32
    scf.if %2 {
      %c0_60 = arith.constant 0 : index
      %c0_61 = arith.constant 0 : index
      %143 = vector.load %arg7[%c0_60, %c0_61] : memref<16x128xf32, #tpu.memory_space<vmem>>, vector<16x128xf32>
      %c0_62 = arith.constant 0 : index
      %c0_63 = arith.constant 0 : index
      %144 = vector.load %arg16[%c0_62, %c0_63] : memref<16x128xf32, #tpu.memory_space<vmem>>, vector<16x128xf32>
      tpu.vector_store %arg16[%c0_62, %c0_63], %143 {strides = array<i32>} : memref<16x128xf32, #tpu.memory_space<vmem>>, vector<16x128xf32>,
    } else {
    }
    %3 = arith.index_cast %arg0 : i32 to index
    %c0 = arith.constant 0 : index
    %4 = memref.load %arg1[%3, %c0] : memref<3x1xf32, #tpu.memory_space<smem>>
    %c0_1 = arith.constant 0 : index
    %c0_2 = arith.constant 0 : index
    %c0_3 = arith.constant 0 : index
    %5 = vector.load %arg2[%c0_1, %c0_2, %c0_3] : memref<1x16x3xf32, #tpu.memory_space<vmem>>, vector<1x16x3xf32>
    %6 = vector.shape_cast %5 : vector<1x16x3xf32> to vector<16x3xf32>
    %7 = vector.extract_strided_slice %6 {offsets = [0, 0], sizes = [16, 1], strides = [1, 1]} : vector<16x3xf32> to vector<16x1xf32>
    %cst = arith.constant 0.000000e+00 : f32
    %8 = vector.broadcast %cst : f32 to vector<16x1xf32>
    %9 = arith.cmpf ogt, %7, %8 : vector<16x1xf32>
    %10 = vector.extract_strided_slice %6 {offsets = [0, 1], sizes = [16, 1], strides = [1, 1]} : vector<16x3xf32> to vector<16x1xf32>
    %11 = vector.broadcast %4 : f32 to vector<16x1xf32>
    %12 = arith.mulf %10, %11 : vector<16x1xf32>
    %cst_4 = arith.constant 0.000000e+00 : f32
    %13 = vector.broadcast %cst_4 : f32 to vector<16x1xf32>
    %14 = arith.cmpf ogt, %12, %13 : vector<16x1xf32>
    %15 = vector.extract_strided_slice %6 {offsets = [0, 2], sizes = [16, 1], strides = [1, 1]} : vector<16x3xf32> to vector<16x1xf32>
    %16 = vector.broadcast %4 : f32 to vector<16x1xf32>
    %17 = arith.mulf %15, %16 : vector<16x1xf32>
    %cst_5 = arith.constant 0.000000e+00 : f32
    %18 = vector.broadcast %cst_5 : f32 to vector<16x1xf32>
    %19 = arith.cmpf ogt, %17, %18 : vector<16x1xf32>
    %20 = arith.ori %14, %19 : vector<16x1xi1>
    %c0_6 = arith.constant 0 : index
    %c0_7 = arith.constant 0 : index
    %c0_8 = arith.constant 0 : index
    %21 = vector.load %arg3[%c0_6, %c0_7, %c0_8] : memref<1x1x16xf32, #tpu.memory_space<vmem>>, vector<1x1x16xf32>
    %22 = vector.shape_cast %21 : vector<1x1x16xf32> to vector<1x16xf32>
    %23 = vector.broadcast %4 : f32 to vector<1x16xf32>
    %24 = arith.mulf %22, %23 : vector<1x16xf32>
    %cst_9 = arith.constant 0.000000e+00 : f32
    %25 = vector.broadcast %cst_9 : f32 to vector<1x16xf32>
    %26 = arith.cmpf ogt, %24, %25 : vector<1x16xf32>
    %c0_10 = arith.constant 0 : index
    %c0_11 = arith.constant 0 : index
    %c0_12 = arith.constant 0 : index
    %27 = vector.load %arg4[%c0_10, %c0_11, %c0_12] : memref<1x16x32xf32, #tpu.memory_space<vmem>>, vector<1x16x32xf32>
    %28 = vector.shape_cast %27 : vector<1x16x32xf32> to vector<16x32xf32>
    %c0_13 = arith.constant 0 : index
    %c0_14 = arith.constant 0 : index
    %29 = vector.load %arg16[%c0_13, %c0_14] : memref<16x128xf32, #tpu.memory_space<vmem>>, vector<16x128xf32>
    %30 = arith.truncf %28 : vector<16x32xf32> to vector<16x32xbf16>
    %c0_15 = arith.constant 0 : index
    %c0_16 = arith.constant 0 : index
    %31 = vector.load %arg8[%c0_15, %c0_16] : memref<32x512xbf16, #tpu.memory_space<vmem>>, vector<32x512xbf16>
    %cst_17 = arith.constant dense<0.000000e+00> : vector<16x512xf32>
    %32 = tpu.matmul %30, %31, %cst_17 {dimension_numbers = #tpu.dot_dimension_numbers<[1], [0], [0], [1], [0, 0, 1, 1], [], []>} : vector<16x32xbf16>, vector<32x512xbf16>, vector<16x512xf32> -> vector<16x512xf32>
    %c0_18 = arith.constant 0 : index
    %c0_19 = arith.constant 0 : index
    %33 = vector.load %arg9[%c0_18, %c0_19] : memref<1x512xf32, #tpu.memory_space<vmem>>, vector<1x512xf32>
    %34 = vector.broadcast %33 : vector<1x512xf32> to vector<16x512xf32>
    %35 = arith.addf %32, %34 : vector<16x512xf32>
    %c0_20 = arith.constant 0 : index
    %c0_21 = arith.constant 0 : index
    %36 = vector.load %arg10[%c0_20, %c0_21] : memref<128x384xf32, #tpu.memory_space<vmem>>, vector<128x384xf32>
    %cst_22 = arith.constant dense<0.000000e+00> : vector<16x384xf32>
    %37 = tpu.matmul %29, %36, %cst_22 {dimension_numbers = #tpu.dot_dimension_numbers<[1], [0], [0], [1], [0, 0, 1, 1], [], []>} : vector<16x128xf32>, vector<128x384xf32>, vector<16x384xf32> -> vector<16x384xf32>
    %c0_23 = arith.constant 0 : index
    %c0_24 = arith.constant 0 : index
    %38 = vector.load %arg11[%c0_23, %c0_24] : memref<1x384xf32, #tpu.memory_space<vmem>>, vector<1x384xf32>
    %39 = vector.broadcast %38 : vector<1x384xf32> to vector<16x384xf32>
    %40 = arith.addf %37, %39 : vector<16x384xf32>
    %41 = vector.extract_strided_slice %35 {offsets = [0, 0], sizes = [16, 384], strides = [1, 1]} : vector<16x512xf32> to vector<16x384xf32>
    %42 = vector.extract_strided_slice %35 {offsets = [0, 384], sizes = [16, 128], strides = [1, 1]} : vector<16x512xf32> to vector<16x128xf32>
    %43 = vector.extract_strided_slice %41 {offsets = [0, 0], sizes = [16, 128], strides = [1, 1]} : vector<16x384xf32> to vector<16x128xf32>
    %44 = vector.extract_strided_slice %40 {offsets = [0, 0], sizes = [16, 128], strides = [1, 1]} : vector<16x384xf32> to vector<16x128xf32>
    %45 = arith.addf %43, %44 : vector<16x128xf32>
    %46 = arith.negf %45 : vector<16x128xf32>
    %47 = math.exp %46 : vector<16x128xf32>
    %cst_25 = arith.constant 1.000000e+00 : f32
    %48 = vector.broadcast %cst_25 : f32 to vector<16x128xf32>
    %49 = arith.addf %48, %47 : vector<16x128xf32>
    %50 = arith.divf %48, %49 : vector<16x128xf32>
    %51 = vector.extract_strided_slice %41 {offsets = [0, 128], sizes = [16, 128], strides = [1, 1]} : vector<16x384xf32> to vector<16x128xf32>
    %52 = vector.extract_strided_slice %40 {offsets = [0, 128], sizes = [16, 128], strides = [1, 1]} : vector<16x384xf32> to vector<16x128xf32>
    %53 = arith.addf %51, %52 : vector<16x128xf32>
    %54 = arith.negf %53 : vector<16x128xf32>
    %55 = math.exp %54 : vector<16x128xf32>
    %cst_26 = arith.constant 1.000000e+00 : f32
    %56 = vector.broadcast %cst_26 : f32 to vector<16x128xf32>
    %57 = arith.addf %56, %55 : vector<16x128xf32>
    %58 = arith.divf %56, %57 : vector<16x128xf32>
    %59 = vector.extract_strided_slice %41 {offsets = [0, 256], sizes = [16, 128], strides = [1, 1]} : vector<16x384xf32> to vector<16x128xf32>
    %60 = vector.extract_strided_slice %40 {offsets = [0, 256], sizes = [16, 128], strides = [1, 1]} : vector<16x384xf32> to vector<16x128xf32>
    %61 = arith.mulf %50, %60 : vector<16x128xf32>
    %62 = arith.addf %59, %61 : vector<16x128xf32>
    %63 = math.tanh %62 : vector<16x128xf32>
    %cst_27 = arith.constant 1.000000e+00 : f32
    %64 = vector.broadcast %cst_27 : f32 to vector<16x128xf32>
    %65 = arith.subf %64, %58 : vector<16x128xf32>
    %66 = arith.mulf %65, %63 : vector<16x128xf32>
    %67 = arith.mulf %58, %29 : vector<16x128xf32>
    %68 = arith.addf %66, %67 : vector<16x128xf32>
    %c0_28 = arith.constant 0 : index
    %c0_29 = arith.constant 0 : index
    %c0_30 = arith.constant 0 : index
    %69 = vector.load %arg5[%c0_28, %c0_29, %c0_30] : memref<1x16x32xf32, #tpu.memory_space<vmem>>, vector<1x16x32xf32>
    %70 = vector.shape_cast %69 : vector<1x16x32xf32> to vector<16x32xf32>
    %c0_31 = arith.constant 0 : index
    %c0_32 = arith.constant 0 : index
    %c0_33 = arith.constant 0 : index
    %71 = vector.load %arg6[%c0_31, %c0_32, %c0_33] : memref<1x16x32xf32, #tpu.memory_space<vmem>>, vector<1x16x32xf32>
    %72 = vector.shape_cast %71 : vector<1x16x32xf32> to vector<16x32xf32>
    %cst_34 = arith.constant 0.000000e+00 : f32
    %73 = vector.shape_cast %19 : vector<16x1xi1> to vector<16x1xi1>
    %74 = vector.broadcast %73 : vector<16x1xi1> to vector<16x32xi1>
    %75 = vector.broadcast %cst_34 : f32 to vector<16x32xf32>
    %76 = arith.select %74, %72, %75 : vector<16x32xi1>, vector<16x32xf32>
    %77 = vector.shape_cast %14 : vector<16x1xi1> to vector<16x1xi1>
    %78 = vector.broadcast %77 : vector<16x1xi1> to vector<16x32xi1>
    %79 = arith.select %78, %70, %76 : vector<16x32xi1>, vector<16x32xf32>
    %80 = arith.truncf %79 : vector<16x32xf32> to vector<16x32xbf16>
    %c0_35 = arith.constant 0 : index
    %c0_36 = arith.constant 0 : index
    %81 = vector.load %arg12[%c0_35, %c0_36] : memref<32x256xbf16, #tpu.memory_space<vmem>>, vector<32x256xbf16>
    %cst_37 = arith.constant dense<0.000000e+00> : vector<16x256xf32>
    %82 = tpu.matmul %80, %81, %cst_37 {dimension_numbers = #tpu.dot_dimension_numbers<[1], [0], [0], [1], [0, 0, 1, 1], [], []>} : vector<16x32xbf16>, vector<32x256xbf16>, vector<16x256xf32> -> vector<16x256xf32>
    %c0_38 = arith.constant 0 : index
    %c0_39 = arith.constant 0 : index
    %83 = vector.load %arg13[%c0_38, %c0_39] : memref<1x256xf32, #tpu.memory_space<vmem>>, vector<1x256xf32>
    %84 = vector.broadcast %83 : vector<1x256xf32> to vector<16x256xf32>
    %85 = arith.addf %82, %84 : vector<16x256xf32>
    %86 = vector.extract_strided_slice %85 {offsets = [0, 0], sizes = [16, 128], strides = [1, 1]} : vector<16x256xf32> to vector<16x128xf32>
    %87 = vector.extract_strided_slice %85 {offsets = [0, 128], sizes = [16, 128], strides = [1, 1]} : vector<16x256xf32> to vector<16x128xf32>
    %88 = arith.truncf %86 : vector<16x128xf32> to vector<16x128xbf16>
    %89 = arith.truncf %87 : vector<16x128xf32> to vector<16x128xbf16>
    %cst_40 = arith.constant dense<0.000000e+00> : vector<16x16xf32>
    %90 = tpu.matmul %88, %89, %cst_40 {dimension_numbers = #tpu.dot_dimension_numbers<[1], [1], [0], [0], [0, 0, 1, 0], [], []>} : vector<16x128xbf16>, vector<16x128xbf16>, vector<16x16xf32> -> vector<16x16xf32>
    %cst_41 = arith.constant -1.000000e+30 : f32
    %91 = vector.shape_cast %26 : vector<1x16xi1> to vector<1x16xi1>
    %92 = vector.broadcast %91 : vector<1x16xi1> to vector<16x16xi1>
    %93 = vector.broadcast %cst_41 : f32 to vector<16x16xf32>
    %94 = arith.select %92, %90, %93 : vector<16x16xi1>, vector<16x16xf32>
    %cst_42 = arith.constant dense<0xFF800000> : vector<16xf32>
    %95 = vector.multi_reduction <maximumf>, %94, %cst_42 [1] : vector<16x16xf32> to vector<16xf32>
    %96 = vector.shape_cast %95 : vector<16xf32> to vector<16x1xf32>
    %97 = vector.broadcast %96 : vector<16x1xf32> to vector<16x16xf32>
    %98 = arith.subf %94, %97 : vector<16x16xf32>
    %99 = math.exp %98 : vector<16x16xf32>
    %cst_43 = arith.constant 0.000000e+00 : f32
    %100 = vector.shape_cast %26 : vector<1x16xi1> to vector<1x16xi1>
    %101 = vector.broadcast %100 : vector<1x16xi1> to vector<16x16xi1>
    %102 = vector.broadcast %cst_43 : f32 to vector<16x16xf32>
    %103 = arith.select %101, %99, %102 : vector<16x16xi1>, vector<16x16xf32>
    %cst_44 = arith.constant dense<0.000000e+00> : vector<16xf32>
    %104 = vector.multi_reduction <add>, %103, %cst_44 [1] : vector<16x16xf32> to vector<16xf32>
    %105 = vector.shape_cast %104 : vector<16xf32> to vector<16x1xf32>
    %cst_45 = arith.constant 1.000000e-30 : f32
    %106 = vector.broadcast %cst_45 : f32 to vector<16x1xf32>
    %107 = arith.maximumf %105, %106 : vector<16x1xf32>
    %108 = tpu.reciprocal %107 {approx = true} : vector<16x1xf32> -> vector<16x1xf32>
    %109 = vector.broadcast %108 : vector<16x1xf32> to vector<16x16xf32>
    %110 = arith.mulf %103, %109 : vector<16x16xf32>
    %111 = arith.truncf %110 : vector<16x16xf32> to vector<16x16xbf16>
    %112 = arith.truncf %42 : vector<16x128xf32> to vector<16x128xbf16>
    %cst_46 = arith.constant dense<0.000000e+00> : vector<16x128xf32>
    %113 = tpu.matmul %111, %112, %cst_46 {dimension_numbers = #tpu.dot_dimension_numbers<[1], [0], [0], [1], [0, 0, 1, 1], [], []>} : vector<16x16xbf16>, vector<16x128xbf16>, vector<16x128xf32> -> vector<16x128xf32>
    %114 = math.tanh %113 : vector<16x128xf32>
    %cst_47 = arith.constant 0.000000e+00 : f32
    %115 = vector.shape_cast %9 : vector<16x1xi1> to vector<16x1xi1>
    %116 = vector.broadcast %115 : vector<16x1xi1> to vector<16x128xi1>
    %117 = vector.broadcast %cst_47 : f32 to vector<16x128xf32>
    %118 = arith.select %116, %68, %117 : vector<16x128xi1>, vector<16x128xf32>
    %119 = vector.shape_cast %20 : vector<16x1xi1> to vector<16x1xi1>
    %120 = vector.broadcast %119 : vector<16x1xi1> to vector<16x128xi1>
    %121 = arith.select %120, %114, %118 : vector<16x128xi1>, vector<16x128xf32>
    %c0_48 = arith.constant 0 : index
    %c0_49 = arith.constant 0 : index
    %122 = vector.load %arg16[%c0_48, %c0_49] : memref<16x128xf32, #tpu.memory_space<vmem>>, vector<16x128xf32>
    tpu.vector_store %arg16[%c0_48, %c0_49], %121 {strides = array<i32>} : memref<16x128xf32, #tpu.memory_space<vmem>>, vector<16x128xf32>,
    %c0_50 = arith.constant 0 : index
    %c0_51 = arith.constant 0 : index
    %123 = vector.load %arg15[%c0_50, %c0_51] : memref<16x128xf32, #tpu.memory_space<vmem>>, vector<16x128xf32>
    tpu.vector_store %arg15[%c0_50, %c0_51], %121 {strides = array<i32>} : memref<16x128xf32, #tpu.memory_space<vmem>>, vector<16x128xf32>,
    %cst_52 = arith.constant -1.000000e+30 : f32
    %124 = vector.broadcast %cst_52 : f32 to vector<16x128xf32>
    %125 = vector.shape_cast %9 : vector<16x1xi1> to vector<16x1xi1>
    %126 = vector.broadcast %125 : vector<16x1xi1> to vector<16x128xi1>
    %127 = arith.select %126, %68, %124 : vector<16x128xi1>, vector<16x128xf32>
    %cst_53 = arith.constant dense<0xFF800000> : vector<128xf32>
    %128 = vector.multi_reduction <maximumf>, %127, %cst_53 [0] : vector<16x128xf32> to vector<128xf32>
    %129 = vector.shape_cast %128 : vector<128xf32> to vector<1x128xf32>
    %130 = vector.shape_cast %20 : vector<16x1xi1> to vector<16x1xi1>
    %131 = vector.broadcast %130 : vector<16x1xi1> to vector<16x128xi1>
    %132 = arith.select %131, %114, %124 : vector<16x128xi1>, vector<16x128xf32>
    %cst_54 = arith.constant dense<0xFF800000> : vector<128xf32>
    %133 = vector.multi_reduction <maximumf>, %132, %cst_54 [0] : vector<16x128xf32> to vector<128xf32>
    %134 = vector.shape_cast %133 : vector<128xf32> to vector<1x128xf32>
    %135 = arith.maximumf %129, %134 : vector<1x128xf32>
    %cst_55 = arith.constant -1.000000e+29 : f32
    %136 = vector.broadcast %cst_55 : f32 to vector<1x128xf32>
    %137 = arith.cmpf ogt, %135, %136 : vector<1x128xf32>
    %cst_56 = arith.constant 0.000000e+00 : f32
    %138 = vector.broadcast %cst_56 : f32 to vector<1x128xf32>
    %139 = arith.select %137, %135, %138 : vector<1x128xi1>, vector<1x128xf32>
    %c0_57 = arith.constant 0 : index
    %c0_58 = arith.constant 0 : index
    %c0_59 = arith.constant 0 : index
    %140 = vector.load %arg14[%c0_57, %c0_58, %c0_59] : memref<1x1x128xf32, #tpu.memory_space<vmem>>, vector<1x1x128xf32>
    %141 = vector.shape_cast %140 : vector<1x1x128xf32> to vector<1x128xf32>
    %142 = vector.shape_cast %139 : vector<1x128xf32> to vector<1x1x128xf32>
    tpu.vector_store %arg14[%c0_57, %c0_58, %c0_59], %142 {strides = array<i32>} : memref<1x1x128xf32, #tpu.memory_space<vmem>>, vector<1x1x128xf32>,
    return
  }
  func.func @transform_0(%arg0: i32) -> (i32, i32) {
    %c0_i32 = arith.constant 0 : i32
    %c0_i32_0 = arith.constant 0 : i32
    %c0_i32_1 = arith.constant 0 : i32
    return %c0_i32, %c0_i32_0 : i32, i32
  }
  func.func @transform_1(%arg0: i32) -> (i32, i32, i32) {
    %c0_i32 = arith.constant 0 : i32
    %c0_i32_0 = arith.constant 0 : i32
    %c0_i32_1 = arith.constant 0 : i32
    return %arg0, %c0_i32, %c0_i32_0 : i32, i32, i32
  }
  func.func @transform_2(%arg0: i32) -> (i32, i32, i32) {
    %c0_i32 = arith.constant 0 : i32
    %c0_i32_0 = arith.constant 0 : i32
    %c0_i32_1 = arith.constant 0 : i32
    return %arg0, %c0_i32, %c0_i32_0 : i32, i32, i32
  }
  func.func @transform_3(%arg0: i32) -> (i32, i32, i32) {
    %c0_i32 = arith.constant 0 : i32
    %c0_i32_0 = arith.constant 0 : i32
    %c0_i32_1 = arith.constant 0 : i32
    return %arg0, %c0_i32, %c0_i32_0 : i32, i32, i32
  }
  func.func @transform_4(%arg0: i32) -> (i32, i32, i32) {
    %c0_i32 = arith.constant 0 : i32
    %c0_i32_0 = arith.constant 0 : i32
    %c0_i32_1 = arith.constant 0 : i32
    return %arg0, %c0_i32, %c0_i32_0 : i32, i32, i32
  }
  func.func @transform_5(%arg0: i32) -> (i32, i32, i32) {
    %c0_i32 = arith.constant 0 : i32
    %c0_i32_0 = arith.constant 0 : i32
    %c0_i32_1 = arith.constant 0 : i32
    return %arg0, %c0_i32, %c0_i32_0 : i32, i32, i32
  }
  func.func @transform_6(%arg0: i32) -> (i32, i32) {
    %c0_i32 = arith.constant 0 : i32
    %c0_i32_0 = arith.constant 0 : i32
    %c0_i32_1 = arith.constant 0 : i32
    return %c0_i32, %c0_i32_0 : i32, i32
  }
  func.func @transform_7(%arg0: i32) -> (i32, i32) {
    %c0_i32 = arith.constant 0 : i32
    %c0_i32_0 = arith.constant 0 : i32
    %c0_i32_1 = arith.constant 0 : i32
    return %c0_i32, %c0_i32_0 : i32, i32
  }
  func.func @transform_8(%arg0: i32) -> (i32, i32) {
    %c0_i32 = arith.constant 0 : i32
    %c0_i32_0 = arith.constant 0 : i32
    %c0_i32_1 = arith.constant 0 : i32
    return %c0_i32, %c0_i32_0 : i32, i32
  }
  func.func @transform_9(%arg0: i32) -> (i32, i32) {
    %c0_i32 = arith.constant 0 : i32
    %c0_i32_0 = arith.constant 0 : i32
    %c0_i32_1 = arith.constant 0 : i32
    return %c0_i32, %c0_i32_0 : i32, i32
  }
  func.func @transform_10(%arg0: i32) -> (i32, i32) {
    %c0_i32 = arith.constant 0 : i32
    %c0_i32_0 = arith.constant 0 : i32
    %c0_i32_1 = arith.constant 0 : i32
    return %c0_i32, %c0_i32_0 : i32, i32
  }
  func.func @transform_11(%arg0: i32) -> (i32, i32) {
    %c0_i32 = arith.constant 0 : i32
    %c0_i32_0 = arith.constant 0 : i32
    %c0_i32_1 = arith.constant 0 : i32
    return %c0_i32, %c0_i32_0 : i32, i32
  }
  func.func @transform_12(%arg0: i32) -> (i32, i32) {
    %c0_i32 = arith.constant 0 : i32
    %c0_i32_0 = arith.constant 0 : i32
    %c0_i32_1 = arith.constant 0 : i32
    return %c0_i32, %c0_i32_0 : i32, i32
  }
  func.func @transform_13(%arg0: i32) -> (i32, i32, i32) {
    %c0_i32 = arith.constant 0 : i32
    %c0_i32_0 = arith.constant 0 : i32
    %c0_i32_1 = arith.constant 0 : i32
    return %arg0, %c0_i32, %c0_i32_0 : i32, i32, i32
  }
  func.func @transform_14(%arg0: i32) -> (i32, i32) {
    %c0_i32 = arith.constant 0 : i32
    %c0_i32_0 = arith.constant 0 : i32
    %c0_i32_1 = arith.constant 0 : i32
    return %c0_i32, %c0_i32_0 : i32, i32
  }
}

</mosaic_0001>

<llo_original>
// kernel: tpu_custom_call.1
$region0: #{tpu_custom_call.1}
  #allocation0 [shape = 'u32[]', space=smem, size = 0x4, offset = 0x4, fixed_abs, tag = 'smem constant byte address 0x4 - core index']
  #allocation1 [shape = 'u32[144,128]{1,0:T(1,128)}', space=vmem, size = 0x12000, scoped, tag = 'internal scratch']
  #allocation2 [shape = 'f32[16,128]{1,0:T(8,128)}', space=vmem, size = 0x2000, scoped, tag = 'scratch operand']
  %s0 = inlined_call_operand.vmem [shape: f32[3,1], index: 0, kind: input, shape index: {}]
  %s1 = inlined_call_operand.vmem [shape: f32[3,16,3], index: 1, kind: input, shape index: {}]
  %s2 = inlined_call_operand.vmem [shape: f32[3,1,16], index: 2, kind: input, shape index: {}]
  %s3 = inlined_call_operand.hbm [shape: f32[3,16,32], index: 3, kind: input, shape index: {}]
  %s4 = inlined_call_operand.hbm [shape: f32[3,16,32], index: 4, kind: input, shape index: {}]
  %s5 = inlined_call_operand.hbm [shape: f32[3,16,32], index: 5, kind: input, shape index: {}]
  %s6 = inlined_call_operand.hbm [shape: f32[16,128], index: 6, kind: input, shape index: {}]
  %s7 = inlined_call_operand.vmem [shape: bf16[32,512], index: 7, kind: input, shape index: {}]
  %s8 = inlined_call_operand.hbm [shape: f32[1,512], index: 8, kind: input, shape index: {}]
  %s9 = inlined_call_operand.hbm [shape: f32[128,384], index: 9, kind: input, shape index: {}]
  %s10 = inlined_call_operand.vmem [shape: f32[1,384], index: 10, kind: input, shape index: {}]
  %s11 = inlined_call_operand.vmem [shape: bf16[32,256], index: 11, kind: input, shape index: {}]
  %s12 = inlined_call_operand.vmem [shape: f32[1,256], index: 12, kind: input, shape index: {}]
  %s13 = inlined_call_operand.hbm [shape: f32[3,1,128], index: 13, kind: output, shape index: {0}]
  %s14 = inlined_call_operand.hbm [shape: f32[16,128], index: 14, kind: output, shape index: {1}]
  %15 = xla_tuple %s13, %s14
  %s16 = sld [smem:[#allocation0]]
  $region125: #{tpu_custom_call.1} parent=0
    _
  %s18 = ssub.s32 1, %s16
  %s19 = scalar_select 0, %s18, %s16
  $region1: #{tpu_custom_call.1} parent=0
    #allocation3 [shape = 'u8[2048]{0}', space=smem, size = 0x800, scoped, tag = 'input window, operand 0, single buffered']
    #allocation4 [shape = 's32[2]{0}', space=sflag, size = 0x8, scoped, tag = 'scoped memory for tpu_custom_call.1']
    #allocation5 [shape = 's32[2]{0}', space=sflag, size = 0x8, scoped, tag = 'scoped memory for tpu_custom_call.1']
    #allocation6 [shape = 's32[2]{0}', space=sflag, size = 0x8, scoped, tag = 'scoped memory for tpu_custom_call.1']
    #allocation7 [shape = 'u8[16384]{0}', space=vmem, size = 0x4000, scoped, tag = 'input window, operand 3']
    #allocation8 [shape = 'u8[16384]{0}', space=vmem, size = 0x4000, scoped, tag = 'input window, operand 4']
    #allocation9 [shape = 's32[2]{0}', space=sflag, size = 0x8, scoped, tag = 'scoped memory for tpu_custom_call.1']
    #allocation10 [shape = 'u8[16384]{0}', space=vmem, size = 0x4000, scoped, tag = 'input window, operand 5']
    #allocation11 [shape = 'u8[8192]{0}', space=vmem, size = 0x2000, scoped, tag = 'input window, operand 6, single buffered']
    #allocation12 [shape = 's32[1]{0}', space=sflag, size = 0x4, scoped, tag = 'scoped memory for tpu_custom_call.1']
    #allocation13 [shape = 'u8[2048]{0}', space=vmem, size = 0x800, scoped, tag = 'input window, operand 8, single buffered']
    #allocation14 [shape = 'u8[196608]{0}', space=vmem, size = 0x30000, scoped, tag = 'input window, operand 9, single buffered']
    #allocation15 [shape = 's32[1]{0}', space=sflag, size = 0x4, scoped, tag = 'scoped memory for tpu_custom_call.1']
    #allocation16 [shape = 'u8[1024]{0}', space=vmem, size = 0x400, scoped, tag = 'output window, operand 0']
    #allocation17 [shape = 'u8[8192]{0}', space=vmem, size = 0x2000, scoped, tag = 'output window, operand 1, single buffered']
    #allocation18 [shape = 's32[1]{0}', space=sflag, size = 0x4, scoped, tag = 'scoped memory for tpu_custom_call.1']
    %20 = vsyncpa [#allocation6], 0
    %21 = vsyncpa [#allocation4], 0
    %s22 = scalar_lea.sflag [#allocation4], 1
    %23 = vsyncpa %s22, 0
    %24 = vsyncpa [#allocation9], 0
    %s25 = scalar_lea.sflag [#allocation9], 1
    %26 = vsyncpa %s25, 0
    %27 = vsyncpa [#allocation12], 0
    %28 = vsyncpa [#allocation15], 0
    %29 = vsyncpa [#allocation5], 0
    %s30 = scalar_lea.sflag [#allocation5], 1
    %31 = vsyncpa %s30, 0
    %32 = vsyncpa [#allocation18], 0
    loop: start=0, step=1, limit=5
    $region2: #{tpu_custom_call.1} parent=1 // loop_pre_header
      _
    $region3: #{tpu_custom_call.1} parent=1 // loop_header
      %s34 = sphi 0, %s38
      %p35 = scmp.ge.s32.totalorder %s34, 5
      %s42 = sphi 0, %s42
      %s44 = sphi 0, %s42
      %s45 = sphi 0, %s44
      %s59 = sphi 0, %s45
      %s65 = sphi 0, %s67
      %s68 = sphi 0, %s65
      %s69 = sphi 0, %s68
      %s85 = sphi 0, %s69
      %s91 = sphi 0, %s93
      %s94 = sphi 0, %s91
      %s95 = sphi 0, %s94
      %s111 = sphi 0, %s95
      %s117 = sphi 0, %s119
      %s120 = sphi 0, %s117
      %s121 = sphi 0, %s120
      %s137 = sphi 0, %s121
      %s143 = sphi 0, %s145
      %s146 = sphi 0, %s143
      %s147 = sphi 0, %s146
      %s163 = sphi 0, %s147
      %s169 = sphi 0, %s171
      %s172 = sphi 0, %s169
      %s173 = sphi 0, %s172
      %s189 = sphi 0, %s173
      %s193 = sphi 0, %s193
      %s195 = sphi 0, %s193
      %s196 = sphi 0, %s195
      %s210 = sphi 0, %s196
      %s214 = sphi 0, %s214
      %s216 = sphi 0, %s214
      %s217 = sphi 0, %s216
      %s231 = sphi 0, %s217
      %s235 = sphi 0, %s235
      %s237 = sphi 0, %s235
      %s238 = sphi 0, %s237
      %s252 = sphi 0, %s238
      %s256 = sphi 0, %s256
      %s258 = sphi 0, %s256
      %s259 = sphi 0, %s258
      %s273 = sphi 0, %s259
      %s277 = sphi 0, %s277
      %s279 = sphi 0, %s277
      %s280 = sphi 0, %s279
      %s294 = sphi 0, %s280
      %s298 = sphi 0, %s298
      %s300 = sphi 0, %s298
      %s301 = sphi 0, %s300
      %s315 = sphi 0, %s301
      %s319 = sphi 0, %s319
      %s321 = sphi 0, %s319
      %s322 = sphi 0, %s321
      %s336 = sphi 0, %s322
      %s342 = sphi 0, %s344
      %s345 = sphi 0, %s342
      %s346 = sphi 0, %s345
      %s362 = sphi 0, %s346
      %s366 = sphi 0, %s366
      %s368 = sphi 0, %s366
      %s369 = sphi 0, %s368
      %s383 = sphi 0, %s369
    $region4: #{tpu_custom_call.1} parent=1 // loop_header_branch
      %37 = sbr.rel (%p35) target = $region8
    $region5: #{tpu_custom_call.1} parent=1 // loop_body
      %s39 = ssub.s32 %s34, 1
      %s40 = ssub.s32 %s34, 2
      %s41 = sadd.s32 %s34, 1
      %s43 = sadd.s32 %s42, 1
      %p46 = scmp.eq.s32.totalorder %s34, 2
      %p47 = scmp.ne.s32.totalorder %s42, %s44
      %p48 = scmp.eq.s32.totalorder %s34, 0
      %p49 = por %p47, %p48
      %p50 = scmp.ne.s32.totalorder %s42, %s44
      %p51 = scmp.eq.s32.totalorder %s39, 2
      %p52 = por %p50, %p51
      %p53 = scmp.ne.s32.totalorder %s44, %s45
      %p54 = scmp.eq.s32.totalorder %s39, 0
      %p55 = por %p53, %p54
      %p56 = scmp.ne.s32.totalorder %s44, %s45
      %p57 = scmp.eq.s32.totalorder %s40, 2
      %p58 = por %p56, %p57
      %p60 = scmp.ne.s32.totalorder %s45, %s59
      %p61 = scmp.eq.s32.totalorder %s40, 0
      %p62 = por %p60, %p61
      %s63 = ssub.s32 %s34, %s41
      %p64 = scmp.eq.s32.totalorder %s63, 0
      %s66 = sadd.s32 %s65, 1
      %s67 = scalar_select %p64, %s65, %s66
      %p70 = pneg %p64
      %p71 = scmp.eq.s32.totalorder %s34, 2
      %p72 = por %p70, %p71
      %p73 = scmp.ne.s32.totalorder %s65, %s68
      %p74 = scmp.eq.s32.totalorder %s34, 0
      %p75 = por %p73, %p74
      %p76 = scmp.ne.s32.totalorder %s65, %s68
      %p77 = scmp.eq.s32.totalorder %s39, 2
      %p78 = por %p76, %p77
      %p79 = scmp.ne.s32.totalorder %s68, %s69
      %p80 = scmp.eq.s32.totalorder %s39, 0
      %p81 = por %p79, %p80
      %p82 = scmp.ne.s32.totalorder %s68, %s69
      %p83 = scmp.eq.s32.totalorder %s40, 2
      %p84 = por %p82, %p83
      %p86 = scmp.ne.s32.totalorder %s69, %s85
      %p87 = scmp.eq.s32.totalorder %s40, 0
      %p88 = por %p86, %p87
      %s89 = ssub.s32 %s34, %s41
      %p90 = scmp.eq.s32.totalorder %s89, 0
      %s92 = sadd.s32 %s91, 1
      %s93 = scalar_select %p90, %s91, %s92
      %p96 = pneg %p90
      %p97 = scmp.eq.s32.totalorder %s34, 2
      %p98 = por %p96, %p97
      %p99 = scmp.ne.s32.totalorder %s91, %s94
      %p100 = scmp.eq.s32.totalorder %s34, 0
      %p101 = por %p99, %p100
      %p102 = scmp.ne.s32.totalorder %s91, %s94
      %p103 = scmp.eq.s32.totalorder %s39, 2
      %p104 = por %p102, %p103
      %p105 = scmp.ne.s32.totalorder %s94, %s95
      %p106 = scmp.eq.s32.totalorder %s39, 0
      %p107 = por %p105, %p106
      %p108 = scmp.ne.s32.totalorder %s94, %s95
      %p109 = scmp.eq.s32.totalorder %s40, 2
      %p110 = por %p108, %p109
      %p112 = scmp.ne.s32.totalorder %s95, %s111
      %p113 = scmp.eq.s32.totalorder %s40, 0
      %p114 = por %p112, %p113
      %s115 = ssub.s32 %s34, %s41
      %p116 = scmp.eq.s32.totalorder %s115, 0
      %s118 = sadd.s32 %s117, 1
      %s119 = scalar_select %p116, %s117, %s118
      %p122 = pneg %p116
      %p123 = scmp.eq.s32.totalorder %s34, 2
      %p124 = por %p122, %p123
      %p125 = scmp.ne.s32.totalorder %s117, %s120
      %p126 = scmp.eq.s32.totalorder %s34, 0
      %p127 = por %p125, %p126
      %p128 = scmp.ne.s32.totalorder %s117, %s120
      %p129 = scmp.eq.s32.totalorder %s39, 2
      %p130 = por %p128, %p129
      %p131 = scmp.ne.s32.totalorder %s120, %s121
      %p132 = scmp.eq.s32.totalorder %s39, 0
      %p133 = por %p131, %p132
      %p134 = scmp.ne.s32.totalorder %s120, %s121
      %p135 = scmp.eq.s32.totalorder %s40, 2
      %p136 = por %p134, %p135
      %p138 = scmp.ne.s32.totalorder %s121, %s137
      %p139 = scmp.eq.s32.totalorder %s40, 0
      %p140 = por %p138, %p139
      %s141 = ssub.s32 %s34, %s41
      %p142 = scmp.eq.s32.totalorder %s141, 0
      %s144 = sadd.s32 %s143, 1
      %s145 = scalar_select %p142, %s143, %s144
      %p148 = pneg %p142
      %p149 = scmp.eq.s32.totalorder %s34, 2
      %p150 = por %p148, %p149
      %p151 = scmp.ne.s32.totalorder %s143, %s146
      %p152 = scmp.eq.s32.totalorder %s34, 0
      %p153 = por %p151, %p152
      %p154 = scmp.ne.s32.totalorder %s143, %s146
      %p155 = scmp.eq.s32.totalorder %s39, 2
      %p156 = por %p154, %p155
      %p157 = scmp.ne.s32.totalorder %s146, %s147
      %p158 = scmp.eq.s32.totalorder %s39, 0
      %p159 = por %p157, %p158
      %p160 = scmp.ne.s32.totalorder %s146, %s147
      %p161 = scmp.eq.s32.totalorder %s40, 2
      %p162 = por %p160, %p161
      %p164 = scmp.ne.s32.totalorder %s147, %s163
      %p165 = scmp.eq.s32.totalorder %s40, 0
      %p166 = por %p164, %p165
      %s167 = ssub.s32 %s34, %s41
      %p168 = scmp.eq.s32.totalorder %s167, 0
      %s170 = sadd.s32 %s169, 1
      %s171 = scalar_select %p168, %s169, %s170
      %p174 = pneg %p168
      %p175 = scmp.eq.s32.totalorder %s34, 2
      %p176 = por %p174, %p175
      %p177 = scmp.ne.s32.totalorder %s169, %s172
      %p178 = scmp.eq.s32.totalorder %s34, 0
      %p179 = por %p177, %p178
      %p180 = scmp.ne.s32.totalorder %s169, %s172
      %p181 = scmp.eq.s32.totalorder %s39, 2
      %p182 = por %p180, %p181
      %p183 = scmp.ne.s32.totalorder %s172, %s173
      %p184 = scmp.eq.s32.totalorder %s39, 0
      %p185 = por %p183, %p184
      %p186 = scmp.ne.s32.totalorder %s172, %s173
      %p187 = scmp.eq.s32.totalorder %s40, 2
      %p188 = por %p186, %p187
      %p190 = scmp.ne.s32.totalorder %s173, %s189
      %p191 = scmp.eq.s32.totalorder %s40, 0
      %p192 = por %p190, %p191
      %s194 = sadd.s32 %s193, 1
      %p197 = scmp.eq.s32.totalorder %s34, 2
      %p198 = scmp.ne.s32.totalorder %s193, %s195
      %p199 = scmp.eq.s32.totalorder %s34, 0
      %p200 = por %p198, %p199
      %p201 = scmp.ne.s32.totalorder %s193, %s195
      %p202 = scmp.eq.s32.totalorder %s39, 2
      %p203 = por %p201, %p202
      %p204 = scmp.ne.s32.totalorder %s195, %s196
      %p205 = scmp.eq.s32.totalorder %s39, 0
      %p206 = por %p204, %p205
      %p207 = scmp.ne.s32.totalorder %s195, %s196
      %p208 = scmp.eq.s32.totalorder %s40, 2
      %p209 = por %p207, %p208
      %p211 = scmp.ne.s32.totalorder %s196, %s210
      %p212 = scmp.eq.s32.totalorder %s40, 0
      %p213 = por %p211, %p212
      %s215 = sadd.s32 %s214, 1
      %p218 = scmp.eq.s32.totalorder %s34, 2
      %p219 = scmp.ne.s32.totalorder %s214, %s216
      %p220 = scmp.eq.s32.totalorder %s34, 0
      %p221 = por %p219, %p220
      %p222 = scmp.ne.s32.totalorder %s214, %s216
      %p223 = scmp.eq.s32.totalorder %s39, 2
      %p224 = por %p222, %p223
      %p225 = scmp.ne.s32.totalorder %s216, %s217
      %p226 = scmp.eq.s32.totalorder %s39, 0
      %p227 = por %p225, %p226
      %p228 = scmp.ne.s32.totalorder %s216, %s217
      %p229 = scmp.eq.s32.totalorder %s40, 2
      %p230 = por %p228, %p229
      %p232 = scmp.ne.s32.totalorder %s217, %s231
      %p233 = scmp.eq.s32.totalorder %s40, 0
      %p234 = por %p232, %p233
      %s236 = sadd.s32 %s235, 1
      %p239 = scmp.eq.s32.totalorder %s34, 2
      %p240 = scmp.ne.s32.totalorder %s235, %s237
      %p241 = scmp.eq.s32.totalorder %s34, 0
      %p242 = por %p240, %p241
      %p243 = scmp.ne.s32.totalorder %s235, %s237
      %p244 = scmp.eq.s32.totalorder %s39, 2
      %p245 = por %p243, %p244
      %p246 = scmp.ne.s32.totalorder %s237, %s238
      %p247 = scmp.eq.s32.totalorder %s39, 0
      %p248 = por %p246, %p247
      %p249 = scmp.ne.s32.totalorder %s237, %s238
      %p250 = scmp.eq.s32.totalorder %s40, 2
      %p251 = por %p249, %p250
      %p253 = scmp.ne.s32.totalorder %s238, %s252
      %p254 = scmp.eq.s32.totalorder %s40, 0
      %p255 = por %p253, %p254
      %s257 = sadd.s32 %s256, 1
      %p260 = scmp.eq.s32.totalorder %s34, 2
      %p261 = scmp.ne.s32.totalorder %s256, %s258
      %p262 = scmp.eq.s32.totalorder %s34, 0
      %p263 = por %p261, %p262
      %p264 = scmp.ne.s32.totalorder %s256, %s258
      %p265 = scmp.eq.s32.totalorder %s39, 2
      %p266 = por %p264, %p265
      %p267 = scmp.ne.s32.totalorder %s258, %s259
      %p268 = scmp.eq.s32.totalorder %s39, 0
      %p269 = por %p267, %p268
      %p270 = scmp.ne.s32.totalorder %s258, %s259
      %p271 = scmp.eq.s32.totalorder %s40, 2
      %p272 = por %p270, %p271
      %p274 = scmp.ne.s32.totalorder %s259, %s273
      %p275 = scmp.eq.s32.totalorder %s40, 0
      %p276 = por %p274, %p275
      %s278 = sadd.s32 %s277, 1
      %p281 = scmp.eq.s32.totalorder %s34, 2
      %p282 = scmp.ne.s32.totalorder %s277, %s279
      %p283 = scmp.eq.s32.totalorder %s34, 0
      %p284 = por %p282, %p283
      %p285 = scmp.ne.s32.totalorder %s277, %s279
      %p286 = scmp.eq.s32.totalorder %s39, 2
      %p287 = por %p285, %p286
      %p288 = scmp.ne.s32.totalorder %s279, %s280
      %p289 = scmp.eq.s32.totalorder %s39, 0
      %p290 = por %p288, %p289
      %p291 = scmp.ne.s32.totalorder %s279, %s280
      %p292 = scmp.eq.s32.totalorder %s40, 2
      %p293 = por %p291, %p292
      %p295 = scmp.ne.s32.totalorder %s280, %s294
      %p296 = scmp.eq.s32.totalorder %s40, 0
      %p297 = por %p295, %p296
      %s299 = sadd.s32 %s298, 1
      %p302 = scmp.eq.s32.totalorder %s34, 2
      %p303 = scmp.ne.s32.totalorder %s298, %s300
      %p304 = scmp.eq.s32.totalorder %s34, 0
      %p305 = por %p303, %p304
      %p306 = scmp.ne.s32.totalorder %s298, %s300
      %p307 = scmp.eq.s32.totalorder %s39, 2
      %p308 = por %p306, %p307
      %p309 = scmp.ne.s32.totalorder %s300, %s301
      %p310 = scmp.eq.s32.totalorder %s39, 0
      %p311 = por %p309, %p310
      %p312 = scmp.ne.s32.totalorder %s300, %s301
      %p313 = scmp.eq.s32.totalorder %s40, 2
      %p314 = por %p312, %p313
      %p316 = scmp.ne.s32.totalorder %s301, %s315
      %p317 = scmp.eq.s32.totalorder %s40, 0
      %p318 = por %p316, %p317
      %s320 = sadd.s32 %s319, 1
      %p323 = scmp.eq.s32.totalorder %s34, 2
      %p324 = scmp.ne.s32.totalorder %s319, %s321
      %p325 = scmp.eq.s32.totalorder %s34, 0
      %p326 = por %p324, %p325
      %p327 = scmp.ne.s32.totalorder %s319, %s321
      %p328 = scmp.eq.s32.totalorder %s39, 2
      %p329 = por %p327, %p328
      %p330 = scmp.ne.s32.totalorder %s321, %s322
      %p331 = scmp.eq.s32.totalorder %s39, 0
      %p332 = por %p330, %p331
      %p333 = scmp.ne.s32.totalorder %s321, %s322
      %p334 = scmp.eq.s32.totalorder %s40, 2
      %p335 = por %p333, %p334
      %p337 = scmp.ne.s32.totalorder %s322, %s336
      %p338 = scmp.eq.s32.totalorder %s40, 0
      %p339 = por %p337, %p338
      %s340 = ssub.s32 %s34, %s41
      %p341 = scmp.eq.s32.totalorder %s340, 0
      %s343 = sadd.s32 %s342, 1
      %s344 = scalar_select %p341, %s342, %s343
      %p347 = pneg %p341
      %p348 = scmp.eq.s32.totalorder %s34, 2
      %p349 = por %p347, %p348
      %p350 = scmp.ne.s32.totalorder %s342, %s345
      %p351 = scmp.eq.s32.totalorder %s34, 0
      %p352 = por %p350, %p351
      %p353 = scmp.ne.s32.totalorder %s342, %s345
      %p354 = scmp.eq.s32.totalorder %s39, 2
      %p355 = por %p353, %p354
      %p356 = scmp.ne.s32.totalorder %s345, %s346
      %p357 = scmp.eq.s32.totalorder %s39, 0
      %p358 = por %p356, %p357
      %p359 = scmp.ne.s32.totalorder %s345, %s346
      %p360 = scmp.eq.s32.totalorder %s40, 2
      %p361 = por %p359, %p360
      %p363 = scmp.ne.s32.totalorder %s346, %s362
      %p364 = scmp.eq.s32.totalorder %s40, 0
      %p365 = por %p363, %p364
      %s367 = sadd.s32 %s366, 1
      %p370 = scmp.eq.s32.totalorder %s34, 2
      %p371 = scmp.ne.s32.totalorder %s366, %s368
      %p372 = scmp.eq.s32.totalorder %s34, 0
      %p373 = por %p371, %p372
      %p374 = scmp.ne.s32.totalorder %s366, %s368
      %p375 = scmp.eq.s32.totalorder %s39, 2
      %p376 = por %p374, %p375
      %p377 = scmp.ne.s32.totalorder %s368, %s369
      %p378 = scmp.eq.s32.totalorder %s39, 0
      %p379 = por %p377, %p378
      %p380 = scmp.ne.s32.totalorder %s368, %s369
      %p381 = scmp.eq.s32.totalorder %s40, 2
      %p382 = por %p380, %p381
      %p384 = scmp.ne.s32.totalorder %s369, %s383
      %p385 = scmp.eq.s32.totalorder %s40, 0
      %p386 = por %p384, %p385
      %p387 = scmp.le.s32.totalorder 1, %s34
      %p388 = scmp.lt.s32.totalorder %s34, 4
      %p389 = pnand %p387, %p388
      %p390 = pneg %p389
      // Predicated region
      $region9: #{tpu_custom_call.1} parent=5 // pred_check
        _
      $region10: #{tpu_custom_call.1} parent=5 // pred_check_branch
        %392 = sbr.rel (%p389) target = $region12
      $region11: #{tpu_custom_call.1} parent=5 // pred_region
        %s393 = ssub.s32 %s34, 1
        // Predicated region
        $region13: #{tpu_custom_call.1} parent=11 // pred_check
          %p394 = pneg %p55
        $region14: #{tpu_custom_call.1} parent=11 // pred_check_branch
          %396 = sbr.rel (%p394) target = $region16
        $region15: #{tpu_custom_call.1} parent=11 // pred_region
          %s398 = ssub.s32 64, 64
          %399 = vsyncadd [#allocation6], %s398
          %s401 = sshll.u32 %s0, 4
          %s402 = int_to_ptr.vmem [resolvable:$true] %s401
          %404 = dma.vmem_to_smem %s402, 64, [#allocation3], [#allocation6]
        $region16: #{tpu_custom_call.1} parent=11 // pred_fallthru
          _
        // Predicated region
        $region17: #{tpu_custom_call.1} parent=11 // pred_check
          %p405 = pneg %p206
        $region18: #{tpu_custom_call.1} parent=11 // pred_check_branch
          %407 = sbr.rel (%p405) target = $region20
        $region19: #{tpu_custom_call.1} parent=11 // pred_region
          %s409 = ssub.s32 256, 256
          %410 = vsyncadd [#allocation12], %s409
          %s411 = sshll.u32 [#allocation11], 4
          %s412 = int_to_ptr.vmem [resolvable:$true] %s411
          %417 = dma.hbm_to_vmem [thread:$0]  %s6, 256, %s412, [#allocation12], 128, 128, 8
        $region20: #{tpu_custom_call.1} parent=11 // pred_fallthru
          _
        // Predicated region
        $region21: #{tpu_custom_call.1} parent=11 // pred_check
          %p418 = pneg %p227
        $region22: #{tpu_custom_call.1} parent=11 // pred_check_branch
          %420 = sbr.rel (%p418) target = $region24
        $region23: #{tpu_custom_call.1} parent=11 // pred_region
          _
        $region24: #{tpu_custom_call.1} parent=11 // pred_fallthru
          _
        // Predicated region
        $region25: #{tpu_custom_call.1} parent=11 // pred_check
          %p421 = pneg %p248
        $region26: #{tpu_custom_call.1} parent=11 // pred_check_branch
          %423 = sbr.rel (%p421) target = $region28
        $region27: #{tpu_custom_call.1} parent=11 // pred_region
          %s425 = ssub.s32 64, 64
          %426 = vsyncadd [#allocation12], %s425
          %s428 = sshll.u32 [#allocation13], 4
          %s429 = int_to_ptr.vmem [resolvable:$true] %s428
          %431 = dma.hbm_to_vmem [thread:$0]  %s8, 64, %s429, [#allocation12]
        $region28: #{tpu_custom_call.1} parent=11 // pred_fallthru
          _
        // Predicated region
        $region29: #{tpu_custom_call.1} parent=11 // pred_check
          %p432 = pneg %p269
        $region30: #{tpu_custom_call.1} parent=11 // pred_check_branch
          %434 = sbr.rel (%p432) target = $region32
        $region31: #{tpu_custom_call.1} parent=11 // pred_region
          %s436 = ssub.s32 6144, 6144
          %437 = vsyncadd [#allocation15], %s436
          %s438 = sshll.u32 [#allocation14], 4
          %s439 = int_to_ptr.vmem [resolvable:$true] %s438
          %444 = dma.hbm_to_vmem [thread:$0]  %s9, 6144, %s439, [#allocation15], 384, 384, 24
        $region32: #{tpu_custom_call.1} parent=11 // pred_fallthru
          _
        // Predicated region
        $region33: #{tpu_custom_call.1} parent=11 // pred_check
          %p445 = pneg %p290
        $region34: #{tpu_custom_call.1} parent=11 // pred_check_branch
          %447 = sbr.rel (%p445) target = $region36
        $region35: #{tpu_custom_call.1} parent=11 // pred_region
          _
        $region36: #{tpu_custom_call.1} parent=11 // pred_fallthru
          _
        // Predicated region
        $region37: #{tpu_custom_call.1} parent=11 // pred_check
          %p448 = pneg %p311
        $region38: #{tpu_custom_call.1} parent=11 // pred_check_branch
          %450 = sbr.rel (%p448) target = $region40
        $region39: #{tpu_custom_call.1} parent=11 // pred_region
          _
        $region40: #{tpu_custom_call.1} parent=11 // pred_fallthru
          _
        // Predicated region
        $region41: #{tpu_custom_call.1} parent=11 // pred_check
          %p451 = pneg %p332
        $region42: #{tpu_custom_call.1} parent=11 // pred_check_branch
          %453 = sbr.rel (%p451) target = $region44
        $region43: #{tpu_custom_call.1} parent=11 // pred_region
          _
        $region44: #{tpu_custom_call.1} parent=11 // pred_fallthru
          _
      $region12: #{tpu_custom_call.1} parent=5 // pred_fallthru
        _
      %p454 = scmp.lt.s32.totalorder %s34, 3
      // Predicated region
      $region45: #{tpu_custom_call.1} parent=5 // pred_check
        %p455 = pneg %p454
      $region46: #{tpu_custom_call.1} parent=5 // pred_check_branch
        %457 = sbr.rel (%p455) target = $region48
      $region47: #{tpu_custom_call.1} parent=5 // pred_region
        // Predicated region
        $region49: #{tpu_custom_call.1} parent=47 // pred_check
          %p458 = pneg %p75
        $region50: #{tpu_custom_call.1} parent=47 // pred_check_branch
          %460 = sbr.rel (%p458) target = $region52
        $region51: #{tpu_custom_call.1} parent=47 // pred_region
          %p461 = scmp.lt.s32.totalorder %s34, 2
          %s462 = scalar_select %p461, %s34, 2
          %s463 = smul.addr %s462, 2
          %s464 = smul.addr %s463, 8
          %s465 = scalar_lea.vmem %s1, %s464
        $region52: #{tpu_custom_call.1} parent=47 // pred_fallthru
          _
        // Predicated region
        $region53: #{tpu_custom_call.1} parent=47 // pred_check
          %p466 = pneg %p101
        $region54: #{tpu_custom_call.1} parent=47 // pred_check_branch
          %468 = sbr.rel (%p466) target = $region56
        $region55: #{tpu_custom_call.1} parent=47 // pred_region
          %p469 = scmp.lt.s32.totalorder %s34, 2
          %s470 = scalar_select %p469, %s34, 2
          %s471 = scalar_lea.vmem %s2, %s470
        $region56: #{tpu_custom_call.1} parent=47 // pred_fallthru
          _
        // Predicated region
        $region57: #{tpu_custom_call.1} parent=47 // pred_check
          %p472 = pneg %p127
        $region58: #{tpu_custom_call.1} parent=47 // pred_check_branch
          %474 = sbr.rel (%p472) target = $region60
        $region59: #{tpu_custom_call.1} parent=47 // pred_region
          %s475 = sand.u32 %s117, 1
          %s476 = scalar_lea.sflag [#allocation4], %s475
          %s477 = sand.u32 %s117, 1
          %s478 = smul.addr %s477, 16
          %s479 = scalar_lea.vmem [#allocation7], %s478
          %s481 = ssub.s32 256, 256
          %482 = vsyncadd %s476, %s481
          %s483 = smul.addr %s34, 2
          %s484 = smul.addr %s483, 128
          %s485 = scalar_lea.hbm %s3, %s484
          %s486 = sshll.u32 %s479, 4
          %s487 = int_to_ptr.vmem [resolvable:$true] %s486
          %492 = dma.hbm_to_vmem [thread:$0]  %s485, 256, %s487, %s476, 128, 128, 8
        $region60: #{tpu_custom_call.1} parent=47 // pred_fallthru
          _
        // Predicated region
        $region61: #{tpu_custom_call.1} parent=47 // pred_check
          %p493 = pneg %p153
        $region62: #{tpu_custom_call.1} parent=47 // pred_check_branch
          %495 = sbr.rel (%p493) target = $region64
        $region63: #{tpu_custom_call.1} parent=47 // pred_region
          %s496 = sand.u32 %s34, 1
          %s497 = scalar_lea.sflag [#allocation9], %s496
          %s498 = sand.u32 %s143, 1
          %s499 = smul.addr %s498, 16
          %s500 = scalar_lea.vmem [#allocation8], %s499
          %s502 = ssub.s32 256, 256
          %503 = vsyncadd %s497, %s502
          %s504 = smul.addr %s34, 2
          %s505 = smul.addr %s504, 128
          %s506 = scalar_lea.hbm %s4, %s505
          %s507 = sshll.u32 %s500, 4
          %s508 = int_to_ptr.vmem [resolvable:$true] %s507
          %513 = dma.hbm_to_vmem [thread:$0]  %s506, 256, %s508, %s497, 128, 128, 8
        $region64: #{tpu_custom_call.1} parent=47 // pred_fallthru
          _
        // Predicated region
        $region65: #{tpu_custom_call.1} parent=47 // pred_check
          %p514 = pneg %p179
        $region66: #{tpu_custom_call.1} parent=47 // pred_check_branch
          %516 = sbr.rel (%p514) target = $region68
        $region67: #{tpu_custom_call.1} parent=47 // pred_region
          %s517 = sand.u32 %s34, 1
          %s518 = scalar_lea.sflag [#allocation9], %s517
          %s519 = sand.u32 %s169, 1
          %s520 = smul.addr %s519, 16
          %s521 = scalar_lea.vmem [#allocation10], %s520
          %s523 = ssub.s32 256, 256
          %524 = vsyncadd %s518, %s523
          %s525 = smul.addr %s34, 2
          %s526 = smul.addr %s525, 128
          %s527 = scalar_lea.hbm %s5, %s526
          %s528 = sshll.u32 %s521, 4
          %s529 = int_to_ptr.vmem [resolvable:$true] %s528
          %534 = dma.hbm_to_vmem [thread:$0]  %s527, 256, %s529, %s518, 128, 128, 8
        $region68: #{tpu_custom_call.1} parent=47 // pred_fallthru
          _
      $region48: #{tpu_custom_call.1} parent=5 // pred_fallthru
        _
      %p535 = scmp.le.s32.totalorder 1, %s34
      %p536 = scmp.lt.s32.totalorder %s34, 4
      %p537 = pnand %p535, %p536
      %p538 = pneg %p537
      // Predicated region
      $region69: #{tpu_custom_call.1} parent=5 // pred_check
        _
      $region70: #{tpu_custom_call.1} parent=5 // pred_check_branch
        %540 = sbr.rel (%p537) target = $region72
      $region71: #{tpu_custom_call.1} parent=5 // pred_region
        %s541 = ssub.s32 %s34, 1
        // Predicated region
        $region73: #{tpu_custom_call.1} parent=71 // pred_check
          %p542 = pneg %p55
        $region74: #{tpu_custom_call.1} parent=71 // pred_check_branch
          %544 = sbr.rel (%p542) target = $region76
        $region75: #{tpu_custom_call.1} parent=71 // pred_region
          %545 = dma.done [#allocation6], 64
        $region76: #{tpu_custom_call.1} parent=71 // pred_fallthru
          _
        %s546 = sand.u32 %s120, 1
        %s547 = scalar_lea.sflag [#allocation4], %s546
        %s548 = sand.u32 %s120, 1
        %s549 = smul.addr %s548, 16
        %s550 = scalar_lea.vmem [#allocation7], %s549
        // Predicated region
        $region77: #{tpu_custom_call.1} parent=71 // pred_check
          %p551 = pneg %p133
        $region78: #{tpu_custom_call.1} parent=71 // pred_check_branch
          %553 = sbr.rel (%p551) target = $region80
        $region79: #{tpu_custom_call.1} parent=71 // pred_region
          %554 = dma.done %s547, 256
        $region80: #{tpu_custom_call.1} parent=71 // pred_fallthru
          _
        %s555 = sand.u32 %s39, 1
        %s556 = scalar_lea.sflag [#allocation9], %s555
        %s557 = sand.u32 %s146, 1
        %s558 = smul.addr %s557, 16
        %s559 = scalar_lea.vmem [#allocation8], %s558
        // Predicated region
        $region81: #{tpu_custom_call.1} parent=71 // pred_check
          %p560 = pneg %p159
        $region82: #{tpu_custom_call.1} parent=71 // pred_check_branch
          %562 = sbr.rel (%p560) target = $region84
        $region83: #{tpu_custom_call.1} parent=71 // pred_region
          %563 = dma.done %s556, 256
        $region84: #{tpu_custom_call.1} parent=71 // pred_fallthru
          _
        %s564 = sand.u32 %s39, 1
        %s565 = scalar_lea.sflag [#allocation9], %s564
        %s566 = sand.u32 %s172, 1
        %s567 = smul.addr %s566, 16
        %s568 = scalar_lea.vmem [#allocation10], %s567
        // Predicated region
        $region85: #{tpu_custom_call.1} parent=71 // pred_check
          %p569 = pneg %p185
        $region86: #{tpu_custom_call.1} parent=71 // pred_check_branch
          %571 = sbr.rel (%p569) target = $region88
        $region87: #{tpu_custom_call.1} parent=71 // pred_region
          %572 = dma.done %s565, 256
        $region88: #{tpu_custom_call.1} parent=71 // pred_fallthru
          _
        // Predicated region
        $region89: #{tpu_custom_call.1} parent=71 // pred_check
          %p573 = pneg %p206
        $region90: #{tpu_custom_call.1} parent=71 // pred_check_branch
          %575 = sbr.rel (%p573) target = $region92
        $region91: #{tpu_custom_call.1} parent=71 // pred_region
          %576 = dma.done [#allocation12], 256
        $region92: #{tpu_custom_call.1} parent=71 // pred_fallthru
          _
        // Predicated region
        $region93: #{tpu_custom_call.1} parent=71 // pred_check
          %p577 = pneg %p248
        $region94: #{tpu_custom_call.1} parent=71 // pred_check_branch
          %579 = sbr.rel (%p577) target = $region96
        $region95: #{tpu_custom_call.1} parent=71 // pred_region
          %580 = dma.done [#allocation12], 64
        $region96: #{tpu_custom_call.1} parent=71 // pred_fallthru
          _
        // Predicated region
        $region97: #{tpu_custom_call.1} parent=71 // pred_check
          %p581 = pneg %p269
        $region98: #{tpu_custom_call.1} parent=71 // pred_check_branch
          %583 = sbr.rel (%p581) target = $region100
        $region99: #{tpu_custom_call.1} parent=71 // pred_region
          %584 = dma.done [#allocation15], 6144
        $region100: #{tpu_custom_call.1} parent=71 // pred_fallthru
          _
        %585 = sfence
        %p586 = pneg %p55
        %p587 = pneg %p52
        %p588 = scmp.lt.s32.totalorder %s39, 2
        %s589 = scalar_select %p588, %s39, 2
        %s590 = smul.addr %s589, 2
        %s591 = smul.addr %s590, 8
        %s592 = scalar_lea.vmem %s1, %s591
        %p593 = pneg %p81
        %p594 = pneg %p78
        %p595 = scmp.lt.s32.totalorder %s39, 2
        %s596 = scalar_select %p595, %s39, 2
        %s597 = scalar_lea.vmem %s2, %s596
        %p598 = pneg %p107
        %p599 = pneg %p104
        %s600 = sand.u32 %s120, 1
        %s601 = scalar_lea.sflag [#allocation4], %s600
        %s602 = sand.u32 %s120, 1
        %s603 = smul.addr %s602, 16
        %s604 = scalar_lea.vmem [#allocation7], %s603
        %p605 = pneg %p133
        %p606 = pneg %p130
        %s607 = sand.u32 %s39, 1
        %s608 = scalar_lea.sflag [#allocation9], %s607
        %s609 = sand.u32 %s146, 1
        %s610 = smul.addr %s609, 16
        %s611 = scalar_lea.vmem [#allocation8], %s610
        %p612 = pneg %p159
        %p613 = pneg %p156
        %s614 = sand.u32 %s39, 1
        %s615 = scalar_lea.sflag [#allocation9], %s614
        %s616 = sand.u32 %s172, 1
        %s617 = smul.addr %s616, 16
        %s618 = scalar_lea.vmem [#allocation10], %s617
        %p619 = pneg %p185
        %p620 = pneg %p182
        %p621 = pneg %p206
        %p622 = pneg %p203
        %p623 = pneg %p227
        %p624 = pneg %p224
        %p625 = pneg %p248
        %p626 = pneg %p245
        %p627 = pneg %p269
        %p628 = pneg %p266
        %p629 = pneg %p290
        %p630 = pneg %p287
        %p631 = pneg %p311
        %p632 = pneg %p308
        %p633 = pneg %p332
        %p634 = pneg %p329
        %p635 = pneg %p358
        %p636 = pneg %p355
        %s637 = sand.u32 %s345, 1
        %s638 = scalar_lea.sflag [#allocation5], %s637
        %s639 = sand.u32 %s345, 1
        %s640 = scalar_lea.vmem [#allocation16], %s639
        %p641 = pneg %p379
        %p642 = pneg %p376
        %p643 = scmp.lt.s32.totalorder %s39, 2
        %s644 = scalar_select %p643, %s39, 2
        %s645 = smul.addr %s644, 2
        %s646 = smul.addr %s645, 8
        %s647 = scalar_lea.vmem %s1, %s646
        %p648 = scmp.lt.s32.totalorder %s39, 2
        %s649 = scalar_select %p648, %s39, 2
        %s650 = scalar_lea.vmem %s2, %s649
        %p652 = scmp.eq.s32.totalorder %s39, 0
        // Predicated region
        $region101: #{tpu_custom_call.1} parent=71 // pred_check
          %p653 = pneg %p652
        $region102: #{tpu_custom_call.1} parent=71 // pred_check_branch
          %655 = sbr.rel (%p653) target = $region104
        $region103: #{tpu_custom_call.1} parent=71 // pred_region
          %v656 = vld [vmem:[#allocation11] sm:$0xff]
          %v657 = vld [vmem:[#allocation11 + $0x8] sm:$0xff]
          %658 = vst [vmem:[#allocation2] sm:$0xff] %v656
          %659 = vst [vmem:[#allocation2 + $0x8] sm:$0xff] %v657
        $region104: #{tpu_custom_call.1} parent=71 // pred_fallthru
          _
        %s660 = smul.u32 %s39, 128
        %s661 = sld [smem:[#allocation3 + %s660]]
        %v662 = vld [vmem:[%s647] sm:$0xff]
        %v663 = vld [vmem:[%s647 + $0x8] sm:$0xff]
        %vm664 = vcmp.gt.f32.partialorder %v662, 0.0
        %vm665 = vcmp.gt.f32.partialorder %v663, 0.0
        %v666 = vstv %s661
        %v667 = vmul.f32 %v662, %v666
        %v668 = vmul.f32 %v663, %v666
        %vm669 = vcmp.gt.f32.partialorder %v667, 0.0
        %vm670 = vcmp.gt.f32.partialorder %v668, 0.0
        %v671 = vsel %vm669, 1, 0
        %v672 = vsel %vm670, 1, 0
        %673 = vrot.lane.b32.xlu0 %v671, 127
        %v674 = vpop.permute.xlu0 %673
        %675 = vrot.lane.b32.xlu0 %v672, 127
        %v676 = vpop.permute.xlu0 %675
        %vm677 = vcmp.ne.s32.totalorder %v674, 0
        %vm678 = vcmp.ne.s32.totalorder %v676, 0
        %vm679 = vmor %vm669, %vm677
        %vm680 = vmor %vm670, %vm678
        %v681 = vld [vmem:[%s650] sm:$0x1]
        %v682 = vmul.f32 %v681, %v666
        %vm683 = vcmp.gt.f32.partialorder %v682, 0.0
        %v684 = vld [vmem:[%s550] sm:$0xff]
        %v685 = vld [vmem:[%s550 + $0x8] sm:$0xff]
        %v686 = vld [vmem:[#allocation2] sm:$0xff]
        %v687 = vld [vmem:[#allocation2 + $0x8] sm:$0xff]
        %v688 = vpack.c.bf16 %v685, %v684
        %v689 = vld [vmem:[%s7] sm:$0xff]
        %v690 = vld [vmem:[%s7 + $0x8] sm:$0xff]
        %v691 = vld [vmem:[%s7 + $0x10] sm:$0xff]
        %v692 = vld [vmem:[%s7 + $0x18] sm:$0xff]
        %v693 = vld [vmem:[%s7 + $0x20] sm:$0xff]
        %v694 = vld [vmem:[%s7 + $0x28] sm:$0xff]
        %v695 = vld [vmem:[%s7 + $0x30] sm:$0xff]
        %v696 = vld [vmem:[%s7 + $0x38] sm:$0xff]
        %v697 = vld [vmem:[#allocation13] sm:$0xf]
        %v699 = vlaneseq
        %v700 = vshrl.u32 %v699, 7
        %v701 = vsub.s32 0, %v700
        %v702 = vrot.slane %v697, %v701
        %v703 = vlaneseq
        %v704 = vshrl.u32 %v703, 7
        %v705 = vsub.s32 1, %v704
        %v706 = vrot.slane %v697, %v705
        %v707 = vlaneseq
        %v708 = vshrl.u32 %v707, 7
        %v709 = vsub.s32 2, %v708
        %v710 = vrot.slane %v697, %v709
        %v711 = vlaneseq
        %v712 = vshrl.u32 %v711, 7
        %v713 = vsub.s32 3, %v712
        %v714 = vrot.slane %v697, %v713
        %v727 = vunpack.c.l.b16 %v689
        %v728 = vunpack.c.h.b16 %v689
        %v729 = vunpack.c.l.b16 %v690
        %v730 = vunpack.c.h.b16 %v690
        %v731 = vunpack.c.l.b16 %v691
        %v732 = vunpack.c.h.b16 %v691
        %v733 = vunpack.c.l.b16 %v692
        %v734 = vunpack.c.h.b16 %v692
        %v735 = vunpack.c.l.b16 %v693
        %v736 = vunpack.c.h.b16 %v693
        %v737 = vunpack.c.l.b16 %v694
        %v738 = vunpack.c.h.b16 %v694
        %v739 = vunpack.c.l.b16 %v695
        %v740 = vunpack.c.h.b16 %v695
        %v741 = vunpack.c.l.b16 %v696
        %v742 = vunpack.c.h.b16 %v696
        %v743 = vpack.c.b16 %v731, %v727
        %v744 = vpack.c.b16 %v732, %v728
        %v745 = vpack.c.b16 %v733, %v729
        %v746 = vpack.c.b16 %v734, %v730
        %v747 = vpack.c.b16 %v739, %v735
        %v748 = vpack.c.b16 %v740, %v736
        %v749 = vpack.c.b16 %v741, %v737
        %v750 = vpack.c.b16 %v742, %v738
        %vm759 = vcmask 261120
        %v761 = vsel %vm759, %v688, 0
        %763 = vmatprep.subr.bf16.mxu0 %v744
        %764 = vmatpush1.bf16.msra.mxu0 %v743
        %765 = vmatprep.subr.bf16.mxu0 %v748
        %766 = vmatpush1.bf16.msra.mxu0 %v747
        %767 = vmatprep.subr.bf16.mxu0 0
        %768 = vmatpush1.bf16.msra.mxu0 0
        %769 = vmatprep.subr.bf16.mxu0 0
        %770 = vmatpush1.bf16.msra.mxu0 0
        %771 = vmatprep.subr.bf16.mxu0 0
        %772 = vmatpush1.bf16.msra.mxu0 0
        %773 = vmatprep.subr.bf16.mxu0 0
        %774 = vmatpush1.bf16.msra.mxu0 0
        %775 = vmatprep.subr.bf16.mxu0 0
        %776 = vmatpush1.bf16.msra.mxu0 0
        %777 = vmatprep.subr.bf16.mxu0 0
        %778 = vmatpush1.bf16.msra.mxu0 0
        %779 = vmatprep.subr.bf16.mxu0 0
        %780 = vmatpush1.bf16.msra.mxu0 0
        %781 = vmatprep.subr.bf16.mxu0 0
        %782 = vmatpush1.bf16.msra.mxu0 0
        %783 = vmatprep.subr.bf16.mxu0 0
        %784 = vmatpush1.bf16.msra.mxu0 0
        %785 = vmatprep.subr.bf16.mxu0 0
        %786 = vmatpush1.bf16.msra.mxu0 0
        %787 = vmatprep.subr.bf16.mxu0 0
        %788 = vmatpush1.bf16.msra.mxu0 0
        %789 = vmatprep.subr.bf16.mxu0 0
        %790 = vmatpush1.bf16.msra.mxu0 0
        %791 = vmatprep.subr.bf16.mxu0 0
        %792 = vmatpush1.bf16.msra.mxu0 0
        %793 = vmatprep.subr.bf16.mxu0 0
        %794 = vmatpush1.bf16.msra.mxu0 0
        %795 = vmatprep.mubr.bf16.mxu0 0
        %796 = vmatmul.mubr.bf16.gmra.mrb[0].mxu0 %v761
        %v797 = vpop.f32.mrb[0].mxu0
        %v798 = vadd.f32 %v702, %v797
        %v799 = vpop.f32.mrb[0].mxu0
        %v800 = vadd.f32 %v706, %v799
        %v801 = vpop.f32.mrb[0].mxu0
        %v802 = vadd.f32 %v702, %v801
        %v803 = vpop.f32.mrb[0].mxu0
        %v804 = vadd.f32 %v706, %v803
        %805 = vdwg.mxu0
        %806 = vmatprep.subr.bf16.mxu0 %v746
        %807 = vmatpush1.bf16.msra.mxu0 %v745
        %808 = vmatprep.subr.bf16.mxu0 %v750
        %809 = vmatpush1.bf16.msra.mxu0 %v749
        %810 = vmatprep.subr.bf16.mxu0 0
        %811 = vmatpush1.bf16.msra.mxu0 0
        %812 = vmatprep.subr.bf16.mxu0 0
        %813 = vmatpush1.bf16.msra.mxu0 0
        %814 = vmatprep.subr.bf16.mxu0 0
        %815 = vmatpush1.bf16.msra.mxu0 0
        %816 = vmatprep.subr.bf16.mxu0 0
        %817 = vmatpush1.bf16.msra.mxu0 0
        %818 = vmatprep.subr.bf16.mxu0 0
        %819 = vmatpush1.bf16.msra.mxu0 0
        %820 = vmatprep.subr.bf16.mxu0 0
        %821 = vmatpush1.bf16.msra.mxu0 0
        %822 = vmatprep.subr.bf16.mxu0 0
        %823 = vmatpush1.bf16.msra.mxu0 0
        %824 = vmatprep.subr.bf16.mxu0 0
        %825 = vmatpush1.bf16.msra.mxu0 0
        %826 = vmatprep.subr.bf16.mxu0 0
        %827 = vmatpush1.bf16.msra.mxu0 0
        %828 = vmatprep.subr.bf16.mxu0 0
        %829 = vmatpush1.bf16.msra.mxu0 0
        %830 = vmatprep.subr.bf16.mxu0 0
        %831 = vmatpush1.bf16.msra.mxu0 0
        %832 = vmatprep.subr.bf16.mxu0 0
        %833 = vmatpush1.bf16.msra.mxu0 0
        %834 = vmatprep.subr.bf16.mxu0 0
        %835 = vmatpush1.bf16.msra.mxu0 0
        %836 = vmatprep.subr.bf16.mxu0 0
        %837 = vmatpush1.bf16.msra.mxu0 0
        %838 = vmatprep.mubr.bf16.mxu0 0
        %839 = vmatmul.mubr.bf16.gmra.mrb[0].mxu0 %v761
        %v840 = vpop.f32.mrb[0].mxu0
        %v841 = vadd.f32 %v710, %v840
        %v842 = vpop.f32.mrb[0].mxu0
        %v843 = vadd.f32 %v714, %v842
        %v844 = vpop.f32.mrb[0].mxu0
        %v845 = vadd.f32 %v710, %v844
        %v846 = vpop.f32.mrb[0].mxu0
        %v847 = vadd.f32 %v714, %v846
        %848 = vdwg.mxu0
        %v849 = vld [vmem:[#allocation14] sm:$0xff]
        %v850 = vld [vmem:[#allocation14 + $0x8] sm:$0xff]
        %v851 = vld [vmem:[#allocation14 + $0x10] sm:$0xff]
        %v852 = vld [vmem:[#allocation14 + $0x18] sm:$0xff]
        %v853 = vld [vmem:[#allocation14 + $0x20] sm:$0xff]
        %v854 = vld [vmem:[#allocation14 + $0x28] sm:$0xff]
        %v855 = vld [vmem:[#allocation14 + $0x30] sm:$0xff]
        %v856 = vld [vmem:[#allocation14 + $0x38] sm:$0xff]
        %v857 = vld [vmem:[#allocation14 + $0x40] sm:$0xff]
        %v858 = vld [vmem:[#allocation14 + $0x48] sm:$0xff]
        %v859 = vld [vmem:[#allocation14 + $0x50] sm:$0xff]
        %v860 = vld [vmem:[#allocation14 + $0x58] sm:$0xff]
        %v861 = vld [vmem:[#allocation14 + $0x60] sm:$0xff]
        %v862 = vld [vmem:[#allocation14 + $0x68] sm:$0xff]
        %v863 = vld [vmem:[#allocation14 + $0x70] sm:$0xff]
        %v864 = vld [vmem:[#allocation14 + $0x78] sm:$0xff]
        %v865 = vld [vmem:[#allocation14 + $0x80] sm:$0xff]
        %v866 = vld [vmem:[#allocation14 + $0x88] sm:$0xff]
        %v867 = vld [vmem:[#allocation14 + $0x90] sm:$0xff]
        %v868 = vld [vmem:[#allocation14 + $0x98] sm:$0xff]
        %v869 = vld [vmem:[#allocation14 + $0xa0] sm:$0xff]
        %v870 = vld [vmem:[#allocation14 + $0xa8] sm:$0xff]
        %v871 = vld [vmem:[#allocation14 + $0xb0] sm:$0xff]
        %v872 = vld [vmem:[#allocation14 + $0xb8] sm:$0xff]
        %v873 = vld [vmem:[#allocation14 + $0xc0] sm:$0xff]
        %v874 = vld [vmem:[#allocation14 + $0xc8] sm:$0xff]
        %v875 = vld [vmem:[#allocation14 + $0xd0] sm:$0xff]
        %v876 = vld [vmem:[#allocation14 + $0xd8] sm:$0xff]
        %v877 = vld [vmem:[#allocation14 + $0xe0] sm:$0xff]
        %v878 = vld [vmem:[#allocation14 + $0xe8] sm:$0xff]
        %v879 = vld [vmem:[#allocation14 + $0xf0] sm:$0xff]
        %v880 = vld [vmem:[#allocation14 + $0xf8] sm:$0xff]
        %v881 = vld [vmem:[#allocation14 + $0x100] sm:$0xff]
        %v882 = vld [vmem:[#allocation14 + $0x108] sm:$0xff]
        %v883 = vld [vmem:[#allocation14 + $0x110] sm:$0xff]
        %v884 = vld [vmem:[#allocation14 + $0x118] sm:$0xff]
        %v885 = vld [vmem:[#allocation14 + $0x120] sm:$0xff]
        %v886 = vld [vmem:[#allocation14 + $0x128] sm:$0xff]
        %v887 = vld [vmem:[#allocation14 + $0x130] sm:$0xff]
        %v888 = vld [vmem:[#allocation14 + $0x138] sm:$0xff]
        %v889 = vld [vmem:[#allocation14 + $0x140] sm:$0xff]
        %v890 = vld [vmem:[#allocation14 + $0x148] sm:$0xff]
        %v891 = vld [vmem:[#allocation14 + $0x150] sm:$0xff]
        %v892 = vld [vmem:[#allocation14 + $0x158] sm:$0xff]
        %v893 = vld [vmem:[#allocation14 + $0x160] sm:$0xff]
        %v894 = vld [vmem:[#allocation14 + $0x168] sm:$0xff]
        %v895 = vld [vmem:[#allocation14 + $0x170] sm:$0xff]
        %v896 = vld [vmem:[#allocation14 + $0x178] sm:$0xff]
        %v897 = vld [vmem:[%s10] sm:$0x7]
        %v899 = vlaneseq
        %v900 = vshrl.u32 %v899, 7
        %v901 = vsub.s32 0, %v900
        %v902 = vrot.slane %v897, %v901
        %v903 = vlaneseq
        %v904 = vshrl.u32 %v903, 7
        %v905 = vsub.s32 1, %v904
        %v906 = vrot.slane %v897, %v905
        %v907 = vlaneseq
        %v908 = vshrl.u32 %v907, 7
        %v909 = vsub.s32 2, %v908
        %v910 = vrot.slane %v897, %v909
        %914 = vmatprep.subr.mxu0 %v850
        %915 = vmatpush1.msra.mxu0 %v849
        %916 = vmatprep.subr.mxu0 %v853
        %917 = vmatpush1.msra.mxu0 %v852
        %918 = vmatprep.subr.mxu0 %v856
        %919 = vmatpush1.msra.mxu0 %v855
        %920 = vmatprep.subr.mxu0 %v859
        %921 = vmatpush1.msra.mxu0 %v858
        %922 = vmatprep.subr.mxu0 %v862
        %923 = vmatpush1.msra.mxu0 %v861
        %924 = vmatprep.subr.mxu0 %v865
        %925 = vmatpush1.msra.mxu0 %v864
        %926 = vmatprep.subr.mxu0 %v868
        %927 = vmatpush1.msra.mxu0 %v867
        %928 = vmatprep.subr.mxu0 %v871
        %929 = vmatpush1.msra.mxu0 %v870
        %930 = vmatprep.subr.mxu0 %v874
        %931 = vmatpush1.msra.mxu0 %v873
        %932 = vmatprep.subr.mxu0 %v877
        %933 = vmatpush1.msra.mxu0 %v876
        %934 = vmatprep.subr.mxu0 %v880
        %935 = vmatpush1.msra.mxu0 %v879
        %936 = vmatprep.subr.mxu0 %v883
        %937 = vmatpush1.msra.mxu0 %v882
        %938 = vmatprep.subr.mxu0 %v886
        %939 = vmatpush1.msra.mxu0 %v885
        %940 = vmatprep.subr.mxu0 %v889
        %941 = vmatpush1.msra.mxu0 %v888
        %942 = vmatprep.subr.mxu0 %v892
        %943 = vmatpush1.msra.mxu0 %v891
        %944 = vmatprep.subr.mxu0 %v895
        %945 = vmatpush1.msra.mxu0 %v894
        %946 = vmatprep.subr.mxu0 0.0
        %947 = vmatpush1.msra.mxu0 0.0
        %948 = vmatprep.subr.mxu0 0.0
        %949 = vmatpush1.msra.mxu0 0.0
        %950 = vmatprep.subr.mxu0 0.0
        %951 = vmatpush1.msra.mxu0 0.0
        %952 = vmatprep.subr.mxu0 0.0
        %953 = vmatpush1.msra.mxu0 0.0
        %954 = vmatprep.subr.mxu0 0.0
        %955 = vmatpush1.msra.mxu0 0.0
        %956 = vmatprep.subr.mxu0 0.0
        %957 = vmatpush1.msra.mxu0 0.0
        %958 = vmatprep.subr.mxu0 0.0
        %959 = vmatpush1.msra.mxu0 0.0
        %960 = vmatprep.subr.mxu0 0.0
        %961 = vmatpush1.msra.mxu0 0.0
        %962 = vmatprep.subr.mxu0 0.0
        %963 = vmatpush1.msra.mxu0 0.0
        %964 = vmatprep.subr.mxu0 0.0
        %965 = vmatpush1.msra.mxu0 0.0
        %966 = vmatprep.subr.mxu0 0.0
        %967 = vmatpush1.msra.mxu0 0.0
        %968 = vmatprep.subr.mxu0 0.0
        %969 = vmatpush1.msra.mxu0 0.0
        %970 = vmatprep.subr.mxu0 0.0
        %971 = vmatpush1.msra.mxu0 0.0
        %972 = vmatprep.subr.mxu0 0.0
        %973 = vmatpush1.msra.mxu0 0.0
        %974 = vmatprep.subr.mxu0 0.0
        %975 = vmatpush1.msra.mxu0 0.0
        %976 = vmatprep.subr.mxu0 0.0
        %977 = vmatpush1.msra.mxu0 0.0
        %978 = vmatprep.mubr.f32.mxu0 0.0
        %979 = vmatmul.mubr.f32.gmra.mrb[0].mxu0 %v686
        %v980 = vpop.f32.mrb[0].mxu0
        %v981 = vadd.f32 %v902, %v980
        %v982 = vpop.f32.mrb[0].mxu0
        %v983 = vadd.f32 %v906, %v982
        %984 = vmatprep.mubr.f32.mxu0 0.0
        %985 = vmatmul.mubr.f32.gmra.mrb[0].mxu0 %v687
        %v986 = vpop.f32.mrb[0].mxu0
        %v987 = vadd.f32 %v902, %v986
        %v988 = vpop.f32.mrb[0].mxu0
        %v989 = vadd.f32 %v906, %v988
        %990 = vdwg.mxu0
        %991 = vmatprep.subr.mxu0 0.0
        %992 = vmatpush1.msra.mxu0 %v851
        %993 = vmatprep.subr.mxu0 0.0
        %994 = vmatpush1.msra.mxu0 %v854
        %995 = vmatprep.subr.mxu0 0.0
        %996 = vmatpush1.msra.mxu0 %v857
        %997 = vmatprep.subr.mxu0 0.0
        %998 = vmatpush1.msra.mxu0 %v860
        %999 = vmatprep.subr.mxu0 0.0
        %1000 = vmatpush1.msra.mxu0 %v863
        %1001 = vmatprep.subr.mxu0 0.0
        %1002 = vmatpush1.msra.mxu0 %v866
        %1003 = vmatprep.subr.mxu0 0.0
        %1004 = vmatpush1.msra.mxu0 %v869
        %1005 = vmatprep.subr.mxu0 0.0
        %1006 = vmatpush1.msra.mxu0 %v872
        %1007 = vmatprep.subr.mxu0 0.0
        %1008 = vmatpush1.msra.mxu0 %v875
        %1009 = vmatprep.subr.mxu0 0.0
        %1010 = vmatpush1.msra.mxu0 %v878
        %1011 = vmatprep.subr.mxu0 0.0
        %1012 = vmatpush1.msra.mxu0 %v881
        %1013 = vmatprep.subr.mxu0 0.0
        %1014 = vmatpush1.msra.mxu0 %v884
        %1015 = vmatprep.subr.mxu0 0.0
        %1016 = vmatpush1.msra.mxu0 %v887
        %1017 = vmatprep.subr.mxu0 0.0
        %1018 = vmatpush1.msra.mxu0 %v890
        %1019 = vmatprep.subr.mxu0 0.0
        %1020 = vmatpush1.msra.mxu0 %v893
        %1021 = vmatprep.subr.mxu0 0.0
        %1022 = vmatpush1.msra.mxu0 %v896
        %1023 = vmatprep.subr.mxu0 0.0
        %1024 = vmatpush1.msra.mxu0 0.0
        %1025 = vmatprep.subr.mxu0 0.0
        %1026 = vmatpush1.msra.mxu0 0.0
        %1027 = vmatprep.subr.mxu0 0.0
        %1028 = vmatpush1.msra.mxu0 0.0
        %1029 = vmatprep.subr.mxu0 0.0
        %1030 = vmatpush1.msra.mxu0 0.0
        %1031 = vmatprep.subr.mxu0 0.0
        %1032 = vmatpush1.msra.mxu0 0.0
        %1033 = vmatprep.subr.mxu0 0.0
        %1034 = vmatpush1.msra.mxu0 0.0
        %1035 = vmatprep.subr.mxu0 0.0
        %1036 = vmatpush1.msra.mxu0 0.0
        %1037 = vmatprep.subr.mxu0 0.0
        %1038 = vmatpush1.msra.mxu0 0.0
        %1039 = vmatprep.subr.mxu0 0.0
        %1040 = vmatpush1.msra.mxu0 0.0
        %1041 = vmatprep.subr.mxu0 0.0
        %1042 = vmatpush1.msra.mxu0 0.0
        %1043 = vmatprep.subr.mxu0 0.0
        %1044 = vmatpush1.msra.mxu0 0.0
        %1045 = vmatprep.subr.mxu0 0.0
        %1046 = vmatpush1.msra.mxu0 0.0
        %1047 = vmatprep.subr.mxu0 0.0
        %1048 = vmatpush1.msra.mxu0 0.0
        %1049 = vmatprep.subr.mxu0 0.0
        %1050 = vmatpush1.msra.mxu0 0.0
        %1051 = vmatprep.subr.mxu0 0.0
        %1052 = vmatpush1.msra.mxu0 0.0
        %1053 = vmatprep.subr.mxu0 0.0
        %1054 = vmatpush1.msra.mxu0 0.0
        %1055 = vmatprep.mubr.f32.mxu0 0.0
        %1056 = vmatmul.mubr.f32.gmra.mrb[0].mxu0 %v686
        %v1057 = vpop.f32.mrb[0].mxu0
        %v1058 = vadd.f32 %v910, %v1057
        %v1059 = vpop.f32.mrb[0].mxu0
        %1060 = vmatprep.mubr.f32.mxu0 0.0
        %1061 = vmatmul.mubr.f32.gmra.mrb[0].mxu0 %v687
        %v1062 = vpop.f32.mrb[0].mxu0
        %v1063 = vadd.f32 %v910, %v1062
        %v1064 = vpop.f32.mrb[0].mxu0
        %1065 = vdwg.mxu0
        %v1066 = vadd.f32 %v798, %v981
        %v1067 = vadd.f32 %v802, %v987
        %v1068 = vxor.u32 %v1066, 2147483648
        %v1069 = vxor.u32 %v1067, 2147483648
        %v1070 = vmul.f32 %v1068, 1.442695
        %v1071 = vpow.pop %v1070
        %v1072 = vmul.f32 %v1069, 1.442695
        %v1073 = vpow.pop %v1072
        %v1074 = vadd.f32 %v1071, 1.0
        %v1075 = vadd.f32 %v1073, 1.0
        %v1076 = vrcp.pop %v1074
        %v1077 = vmul.f32 1.0, %v1076
        %v1078 = vrcp.pop %v1075
        %v1079 = vmul.f32 1.0, %v1078
        %v1080 = vadd.f32 %v800, %v983
        %v1081 = vadd.f32 %v804, %v989
        %v1082 = vxor.u32 %v1080, 2147483648
        %v1083 = vxor.u32 %v1081, 2147483648
        %v1084 = vmul.f32 %v1082, 1.442695
        %v1085 = vpow.pop %v1084
        %v1086 = vmul.f32 %v1083, 1.442695
        %v1087 = vpow.pop %v1086
        %v1088 = vadd.f32 %v1085, 1.0
        %v1089 = vadd.f32 %v1087, 1.0
        %v1090 = vrcp.pop %v1088
        %v1091 = vmul.f32 1.0, %v1090
        %v1092 = vrcp.pop %v1089
        %v1093 = vmul.f32 1.0, %v1092
        %v1094 = vmul.f32 %v1077, %v1058
        %v1095 = vmul.f32 %v1079, %v1063
        %v1096 = vadd.f32 %v841, %v1094
        %v1097 = vadd.f32 %v845, %v1095
        %v1098 = vtanh.pop %v1096
        %v1099 = vtanh.pop %v1097
        %v1100 = vsub.f32 1.0, %v1091
        %v1101 = vsub.f32 1.0, %v1093
        %v1102 = vmul.f32 %v1100, %v1098
        %v1103 = vmul.f32 %v1101, %v1099
        %v1104 = vmul.f32 %v1091, %v686
        %v1105 = vmul.f32 %v1093, %v687
        %v1106 = vadd.f32 %v1102, %v1104
        %v1107 = vadd.f32 %v1103, %v1105
        %v1108 = vld [vmem:[%s559] sm:$0xff]
        %v1109 = vld [vmem:[%s559 + $0x8] sm:$0xff]
        %v1110 = vld [vmem:[%s568] sm:$0xff]
        %v1111 = vld [vmem:[%s568 + $0x8] sm:$0xff]
        %1112 = vset.pattern.permute.xlu0 2
        %1113 = vperm.xlu0 %1112, %v671
        %v1114 = vpop.permute.xlu0 %1113
        %1115 = vset.pattern.permute.xlu0 2
        %1116 = vperm.xlu0 %1115, %v672
        %v1117 = vpop.permute.xlu0 %1116
        %vm1118 = vcmp.eq.s32.totalorder %v1114, 1
        %vm1119 = vcmp.eq.s32.totalorder %v1117, 1
        %v1120 = vsel %vm1118, %v1110, 0.0
        %v1121 = vsel %vm1119, %v1111, 0.0
        %1122 = vset.pattern.permute.xlu0 1
        %1123 = vperm.xlu0 %1122, %v671
        %v1124 = vpop.permute.xlu0 %1123
        %1125 = vset.pattern.permute.xlu0 1
        %1126 = vperm.xlu0 %1125, %v672
        %v1127 = vpop.permute.xlu0 %1126
        %vm1128 = vcmp.eq.s32.totalorder %v1124, 1
        %vm1129 = vcmp.eq.s32.totalorder %v1127, 1
        %v1130 = vsel %vm1128, %v1108, %v1120
        %v1131 = vsel %vm1129, %v1109, %v1121
        %v1132 = vpack.c.bf16 %v1131, %v1130
        %v1133 = vld [vmem:[%s11] sm:$0xff]
        %v1134 = vld [vmem:[%s11 + $0x8] sm:$0xff]
        %v1135 = vld [vmem:[%s11 + $0x10] sm:$0xff]
        %v1136 = vld [vmem:[%s11 + $0x18] sm:$0xff]
        %v1137 = vld [vmem:[%s12] sm:$0x3]
        %v1139 = vlaneseq
        %v1140 = vshrl.u32 %v1139, 7
        %v1141 = vsub.s32 0, %v1140
        %v1142 = vrot.slane %v1137, %v1141
        %v1143 = vlaneseq
        %v1144 = vshrl.u32 %v1143, 7
        %v1145 = vsub.s32 1, %v1144
        %v1146 = vrot.slane %v1137, %v1145
        %v1153 = vunpack.c.l.b16 %v1133
        %v1154 = vunpack.c.h.b16 %v1133
        %v1155 = vunpack.c.l.b16 %v1134
        %v1156 = vunpack.c.h.b16 %v1134
        %v1157 = vunpack.c.l.b16 %v1135
        %v1158 = vunpack.c.h.b16 %v1135
        %v1159 = vunpack.c.l.b16 %v1136
        %v1160 = vunpack.c.h.b16 %v1136
        %v1161 = vpack.c.b16 %v1155, %v1153
        %v1162 = vpack.c.b16 %v1156, %v1154
        %v1163 = vpack.c.b16 %v1159, %v1157
        %v1164 = vpack.c.b16 %v1160, %v1158
        %v1170 = vsel %vm759, %v1132, 0
        %1172 = vmatprep.subr.bf16.mxu0 %v1162
        %1173 = vmatpush1.bf16.msra.mxu0 %v1161
        %1174 = vmatprep.subr.bf16.mxu0 %v1164
        %1175 = vmatpush1.bf16.msra.mxu0 %v1163
        %1176 = vmatprep.subr.bf16.mxu0 0
        %1177 = vmatpush1.bf16.msra.mxu0 0
        %1178 = vmatprep.subr.bf16.mxu0 0
        %1179 = vmatpush1.bf16.msra.mxu0 0
        %1180 = vmatprep.subr.bf16.mxu0 0
        %1181 = vmatpush1.bf16.msra.mxu0 0
        %1182 = vmatprep.subr.bf16.mxu0 0
        %1183 = vmatpush1.bf16.msra.mxu0 0
        %1184 = vmatprep.subr.bf16.mxu0 0
        %1185 = vmatpush1.bf16.msra.mxu0 0
        %1186 = vmatprep.subr.bf16.mxu0 0
        %1187 = vmatpush1.bf16.msra.mxu0 0
        %1188 = vmatprep.subr.bf16.mxu0 0
        %1189 = vmatpush1.bf16.msra.mxu0 0
        %1190 = vmatprep.subr.bf16.mxu0 0
        %1191 = vmatpush1.bf16.msra.mxu0 0
        %1192 = vmatprep.subr.bf16.mxu0 0
        %1193 = vmatpush1.bf16.msra.mxu0 0
        %1194 = vmatprep.subr.bf16.mxu0 0
        %1195 = vmatpush1.bf16.msra.mxu0 0
        %1196 = vmatprep.subr.bf16.mxu0 0
        %1197 = vmatpush1.bf16.msra.mxu0 0
        %1198 = vmatprep.subr.bf16.mxu0 0
        %1199 = vmatpush1.bf16.msra.mxu0 0
        %1200 = vmatprep.subr.bf16.mxu0 0
        %1201 = vmatpush1.bf16.msra.mxu0 0
        %1202 = vmatprep.subr.bf16.mxu0 0
        %1203 = vmatpush1.bf16.msra.mxu0 0
        %1204 = vmatprep.mubr.bf16.mxu0 0
        %1205 = vmatmul.mubr.bf16.gmra.mrb[0].mxu0 %v1170
        %v1206 = vpop.f32.mrb[0].mxu0
        %v1207 = vadd.f32 %v1142, %v1206
        %v1208 = vpop.f32.mrb[0].mxu0
        %v1209 = vadd.f32 %v1146, %v1208
        %v1210 = vpop.f32.mrb[0].mxu0
        %v1211 = vadd.f32 %v1142, %v1210
        %v1212 = vpop.f32.mrb[0].mxu0
        %v1213 = vadd.f32 %v1146, %v1212
        %1214 = vdwg.mxu0
        %v1215 = vpack.c.bf16 %v1211, %v1207
        %v1216 = vpack.c.bf16 %v1213, %v1209
        %1217 = vmatprep.subr.bf16.mxu0 0
        %1218 = vmatpush1.bf16.xpose.msra.mxu0 %v1216
        %1219 = vmatprep.subr.bf16.mxu0 0
        %1220 = vmatpush1.bf16.xpose.msra.mxu0 0
        %1221 = vmatprep.subr.bf16.mxu0 0
        %1222 = vmatpush1.bf16.xpose.msra.mxu0 0
        %1223 = vmatprep.subr.bf16.mxu0 0
        %1224 = vmatpush1.bf16.xpose.msra.mxu0 0
        %1225 = vmatprep.subr.bf16.mxu0 0
        %1226 = vmatpush1.bf16.xpose.msra.mxu0 0
        %1227 = vmatprep.subr.bf16.mxu0 0
        %1228 = vmatpush1.bf16.xpose.msra.mxu0 0
        %1229 = vmatprep.subr.bf16.mxu0 0
        %1230 = vmatpush1.bf16.xpose.msra.mxu0 0
        %1231 = vmatprep.subr.bf16.mxu0 0
        %1232 = vmatpush1.bf16.xpose.msra.mxu0 0
        %1233 = vmatprep.subr.bf16.mxu0 0
        %1234 = vmatpush1.bf16.xpose.msra.mxu0 0
        %1235 = vmatprep.subr.bf16.mxu0 0
        %1236 = vmatpush1.bf16.xpose.msra.mxu0 0
        %1237 = vmatprep.subr.bf16.mxu0 0
        %1238 = vmatpush1.bf16.xpose.msra.mxu0 0
        %1239 = vmatprep.subr.bf16.mxu0 0
        %1240 = vmatpush1.bf16.xpose.msra.mxu0 0
        %1241 = vmatprep.subr.bf16.mxu0 0
        %1242 = vmatpush1.bf16.xpose.msra.mxu0 0
        %1243 = vmatprep.subr.bf16.mxu0 0
        %1244 = vmatpush1.bf16.xpose.msra.mxu0 0
        %1245 = vmatprep.subr.bf16.mxu0 0
        %1246 = vmatpush1.bf16.xpose.msra.mxu0 0
        %1247 = vmatprep.subr.bf16.mxu0 0
        %1248 = vmatpush1.bf16.xpose.msra.mxu0 0
        %1249 = vmatprep.mubr.bf16.mxu0 0
        %1250 = vmatmul.mubr.bf16.gmra.mrb[0].mxu0 %v1215
        %v1251 = vpop.f32.mrb[0].mxu0
        %v1252 = vadd.f32 0.0, %v1251
        %v1253 = vpop.f32.mrb[0].mxu0
        %v1254 = vpop.f32.mrb[0].mxu0
        %v1255 = vadd.f32 0.0, %v1254
        %v1256 = vpop.f32.mrb[0].mxu0
        %1257 = vdwg.mxu0
        %v1258 = vsel %vm683, 1, 0
        %v1259 = vlaneseq
        %v1260 = vshrl.u32 %v1259, 7
        %v1261 = vsub.s32 0, %v1260
        %v1262 = vrot.slane %v1258, %v1261
        %vm1263 = vcmp.eq.s32.totalorder %v1262, 1
        %v1264 = vsel %vm1263, %v1252, -1e+30
        %v1265 = vsel %vm1263, %v1255, -1e+30
        %vm1266 = vcmask 130048
        %v1267 = vsel %vm1266, %v1264, -inf
        %1268 = vmax.xlane.f32.xlu0 %v1267
        %v1269 = vpop.xlane.xlu0 %1268
        %v1270 = vsel %vm1266, %v1265, -inf
        %1271 = vmax.xlane.f32.xlu0 %v1270
        %v1272 = vpop.xlane.xlu0 %1271
        %v1273 = vsub.f32 %v1264, %v1269
        %v1274 = vsub.f32 %v1265, %v1272
        %v1275 = vmul.f32 %v1273, 1.442695
        %v1276 = vpow.pop %v1275
        %v1277 = vmul.f32 %v1274, 1.442695
        %v1278 = vpow.pop %v1277
        %v1279 = vsel %vm1263, %v1276, 0.0
        %v1280 = vsel %vm1263, %v1278, 0.0
        %v1281 = vsel %vm1266, %v1279, 0.0
        %1282 = vadd.xlane.f32.xlu0 %v1281
        %v1283 = vpop.xlane.xlu0 %1282
        %v1284 = vsel %vm1266, %v1280, 0.0
        %1285 = vadd.xlane.f32.xlu0 %v1284
        %v1286 = vpop.xlane.xlu0 %1285
        %v1287 = vmax.f32 %v1283, 1e-30
        %v1288 = vmax.f32 %v1286, 1e-30
        %v1289 = vrcp.pop %v1287
        %v1290 = vrcp.pop %v1288
        %v1291 = vmul.f32 %v1279, %v1289
        %v1292 = vmul.f32 %v1280, %v1290
        %v1293 = vpack.c.bf16 %v1292, %v1291
        %v1294 = vpack.c.bf16 %v847, %v843
        %v1296 = vsel %vm1266, %v1293, 0
        %1298 = vmatprep.subr.bf16.mxu0 0
        %1299 = vmatpush1.bf16.msra.mxu0 %v1294
        %1300 = vmatprep.subr.bf16.mxu0 0
        %1301 = vmatpush1.bf16.msra.mxu0 0
        %1302 = vmatprep.subr.bf16.mxu0 0
        %1303 = vmatpush1.bf16.msra.mxu0 0
        %1304 = vmatprep.subr.bf16.mxu0 0
        %1305 = vmatpush1.bf16.msra.mxu0 0
        %1306 = vmatprep.subr.bf16.mxu0 0
        %1307 = vmatpush1.bf16.msra.mxu0 0
        %1308 = vmatprep.subr.bf16.mxu0 0
        %1309 = vmatpush1.bf16.msra.mxu0 0
        %1310 = vmatprep.subr.bf16.mxu0 0
        %1311 = vmatpush1.bf16.msra.mxu0 0
        %1312 = vmatprep.subr.bf16.mxu0 0
        %1313 = vmatpush1.bf16.msra.mxu0 0
        %1314 = vmatprep.subr.bf16.mxu0 0
        %1315 = vmatpush1.bf16.msra.mxu0 0
        %1316 = vmatprep.subr.bf16.mxu0 0
        %1317 = vmatpush1.bf16.msra.mxu0 0
        %1318 = vmatprep.subr.bf16.mxu0 0
        %1319 = vmatpush1.bf16.msra.mxu0 0
        %1320 = vmatprep.subr.bf16.mxu0 0
        %1321 = vmatpush1.bf16.msra.mxu0 0
        %1322 = vmatprep.subr.bf16.mxu0 0
        %1323 = vmatpush1.bf16.msra.mxu0 0
        %1324 = vmatprep.subr.bf16.mxu0 0
        %1325 = vmatpush1.bf16.msra.mxu0 0
        %1326 = vmatprep.subr.bf16.mxu0 0
        %1327 = vmatpush1.bf16.msra.mxu0 0
        %1328 = vmatprep.subr.bf16.mxu0 0
        %1329 = vmatpush1.bf16.msra.mxu0 0
        %1330 = vmatprep.mubr.bf16.mxu0 0
        %1331 = vmatmul.mubr.bf16.gmra.mrb[0].mxu0 %v1296
        %v1332 = vpop.f32.mrb[0].mxu0
        %v1333 = vadd.f32 0.0, %v1332
        %v1334 = vpop.f32.mrb[0].mxu0
        %v1335 = vpop.f32.mrb[0].mxu0
        %v1336 = vadd.f32 0.0, %v1335
        %v1337 = vpop.f32.mrb[0].mxu0
        %1338 = vdwg.mxu0
        %v1339 = vtanh.pop %v1333
        %v1340 = vtanh.pop %v1336
        %v1341 = vsel %vm664, 1, 0
        %v1342 = vsel %vm665, 1, 0
        %1343 = vset.pattern.permute.xlu0 0
        %1344 = vperm.xlu0 %1343, %v1341
        %v1345 = vpop.permute.xlu0 %1344
        %1346 = vset.pattern.permute.xlu0 0
        %1347 = vperm.xlu0 %1346, %v1342
        %v1348 = vpop.permute.xlu0 %1347
        %vm1349 = vcmp.eq.s32.totalorder %v1345, 1
        %vm1350 = vcmp.eq.s32.totalorder %v1348, 1
        %v1351 = vsel %vm1349, %v1106, 0.0
        %v1352 = vsel %vm1350, %v1107, 0.0
        %v1353 = vsel %vm679, 1, 0
        %v1354 = vsel %vm680, 1, 0
        %1355 = vset.pattern.permute.xlu0 1
        %1356 = vperm.xlu0 %1355, %v1353
        %v1357 = vpop.permute.xlu0 %1356
        %1358 = vset.pattern.permute.xlu0 1
        %1359 = vperm.xlu0 %1358, %v1354
        %v1360 = vpop.permute.xlu0 %1359
        %vm1361 = vcmp.eq.s32.totalorder %v1357, 1
        %vm1362 = vcmp.eq.s32.totalorder %v1360, 1
        %v1363 = vsel %vm1361, %v1339, %v1351
        %v1364 = vsel %vm1362, %v1340, %v1352
        %1365 = vst [vmem:[#allocation2] sm:$0xff] %v1363
        %1366 = vst [vmem:[#allocation2 + $0x8] sm:$0xff] %v1364
        %1367 = vst [vmem:[#allocation17] sm:$0xff] %v1363
        %1368 = vst [vmem:[#allocation17 + $0x8] sm:$0xff] %v1364
        %v1369 = vsel %vm1349, %v1106, -1e+30
        %v1370 = vsel %vm1350, %v1107, -1e+30
        %v1371 = vmax.f32 %v1369, %v1370
        %v1372 = vrot.slane %v1371, 4
        %v1373 = vmax.f32 %v1371, %v1372
        %v1374 = vrot.slane %v1373, 2
        %v1375 = vmax.f32 %v1373, %v1374
        %v1376 = vrot.slane %v1375, 1
        %v1377 = vmax.f32 %v1375, %v1376
        %v1378 = vsel %vm1361, %v1339, -1e+30
        %v1379 = vsel %vm1362, %v1340, -1e+30
        %v1380 = vmax.f32 %v1378, %v1379
        %v1381 = vrot.slane %v1380, 4
        %v1382 = vmax.f32 %v1380, %v1381
        %v1383 = vrot.slane %v1382, 2
        %v1384 = vmax.f32 %v1382, %v1383
        %v1385 = vrot.slane %v1384, 1
        %v1386 = vmax.f32 %v1384, %v1385
        %v1387 = vmax.f32 %v1377, %v1386
        %vm1388 = vcmp.gt.f32.partialorder %v1387, -1e+29
        %v1389 = vsel %vm1388, %v1387, 0.0
        %1390 = vst [vmem:[%s640] sm:$0x1] %v1389
        %s1391 = sand.u32 %s345, 1
        %s1392 = scalar_lea.sflag [#allocation5], %s1391
        %s1393 = sand.u32 %s345, 1
        %s1394 = scalar_lea.vmem [#allocation16], %s1393
        // Predicated region
        $region105: #{tpu_custom_call.1} parent=71 // pred_check
          %p1395 = pneg %p355
        $region106: #{tpu_custom_call.1} parent=71 // pred_check_branch
          %1397 = sbr.rel (%p1395) target = $region108
        $region107: #{tpu_custom_call.1} parent=71 // pred_region
          %s1399 = ssub.s32 16, 16
          %1400 = vsyncadd %s1392, %s1399
          %s1401 = smul.addr %s39, 16
          %s1402 = scalar_lea.hbm %s13, %s1401
          %s1404 = sshll.u32 %s1394, 4
          %s1405 = int_to_ptr.vmem [resolvable:$true] %s1404
          %1407 = dma.vmem_to_hbm [thread:$0]  %s1405, 16, %s1402, %s1392
        $region108: #{tpu_custom_call.1} parent=71 // pred_fallthru
          _
        // Predicated region
        $region109: #{tpu_custom_call.1} parent=71 // pred_check
          %p1408 = pneg %p376
        $region110: #{tpu_custom_call.1} parent=71 // pred_check_branch
          %1410 = sbr.rel (%p1408) target = $region112
        $region111: #{tpu_custom_call.1} parent=71 // pred_region
          %s1412 = ssub.s32 256, 256
          %1413 = vsyncadd [#allocation18], %s1412
          %s1414 = sshll.u32 [#allocation17], 4
          %s1415 = int_to_ptr.vmem [resolvable:$true] %s1414
          %1420 = dma.vmem_to_hbm [thread:$0]  %s1415, 256, %s14, [#allocation18], 128, 128, 8
        $region112: #{tpu_custom_call.1} parent=71 // pred_fallthru
          _
        // Predicated region
        $region113: #{tpu_custom_call.1} parent=71 // pred_check
          %p1421 = pneg %p376
        $region114: #{tpu_custom_call.1} parent=71 // pred_check_branch
          %1423 = sbr.rel (%p1421) target = $region116
        $region115: #{tpu_custom_call.1} parent=71 // pred_region
          %1424 = dma.done [#allocation18], 256
        $region116: #{tpu_custom_call.1} parent=71 // pred_fallthru
          _
      $region72: #{tpu_custom_call.1} parent=5 // pred_fallthru
        _
      %p1425 = scmp.le.s32.totalorder 2, %s34
      // Predicated region
      $region117: #{tpu_custom_call.1} parent=5 // pred_check
        %p1426 = pneg %p1425
      $region118: #{tpu_custom_call.1} parent=5 // pred_check_branch
        %1428 = sbr.rel (%p1426) target = $region120
      $region119: #{tpu_custom_call.1} parent=5 // pred_region
        %s1429 = ssub.s32 %s34, 2
        // Predicated region
        $region121: #{tpu_custom_call.1} parent=119 // pred_check
          %p1430 = pneg %p361
        $region122: #{tpu_custom_call.1} parent=119 // pred_check_branch
          %1432 = sbr.rel (%p1430) target = $region124
        $region123: #{tpu_custom_call.1} parent=119 // pred_region
          %s1433 = sand.u32 %s346, 1
          %s1434 = scalar_lea.sflag [#allocation5], %s1433
          %s1435 = sand.u32 %s346, 1
          %s1436 = scalar_lea.vmem [#allocation16], %s1435
          %1437 = dma.done %s1434, 16
        $region124: #{tpu_custom_call.1} parent=119 // pred_fallthru
          _
      $region120: #{tpu_custom_call.1} parent=5 // pred_fallthru
        _
    $region6: #{tpu_custom_call.1} parent=1 // loop_footer
      %s38 = sadd.s32 1, %s34
    $region7: #{tpu_custom_call.1} parent=1 // loop_footer_branch
      %33 = sbr.rel target = $region3
    $region8: #{tpu_custom_call.1} parent=1 // loop_exit
      _
    %1438 = vsyncpa [#allocation4], 1
    %s1439 = scalar_lea.sflag [#allocation4], 1
    %1440 = vsyncpa %s1439, 1
    %1441 = vsyncpa [#allocation9], 1
    %s1442 = scalar_lea.sflag [#allocation9], 1
    %1443 = vsyncpa %s1442, 1
    %1444 = vsyncpa [#allocation12], 1
    %1445 = vsyncpa [#allocation15], 1
    %1446 = vsyncpa [#allocation5], 1
    %s1447 = scalar_lea.sflag [#allocation5], 1
    %1448 = vsyncpa %s1447, 1
    %1449 = vsyncpa [#allocation18], 1
    %1450 = vsyncpa [#allocation6], 1
    %s1451 = scalar_lea.sflag [#allocation6], 1
    %1452 = vsyncpa %s1451, 1

</llo_original>
